<compile_context>
chip_gen: v7x
topology: tpu7x:2x2x1
jax: 0.10.0
libtpu: 0.0.40
codegen_flags: <defaults>
</compile_context>

<pallas_src>
import math

import jax
import jax.numpy as jnp
from jax.experimental import pallas as pl
from jax.experimental.pallas import tpu as pltpu


def _round_up(a, m):
    return ((a + m - 1) // m) * m


def torchnet_kernel(x_ref, w1_ref, b1_ref, w2_ref, b2_ref,
                    w3_ref, b3_ref, w4_ref, b4_ref, o_ref):
    """Fused TorchNet forward for one batch tile, batch-on-lanes layout.

    x_ref : (3, T)    input (features on sublanes, batch on lanes)
    w1_ref: (24, 3)   Linear(3,24) weight (torch layout: out x in)
    b1_ref: (24, 1)
    w2_ref: (3, 24)   Linear(24,3) weight (out x in)
    b2_ref: (3, 1)
    w3_ref: (64, 3)   Linear(3,64) weight (out x in)
    b3_ref: (64, 1)
    w4_ref: (1, 64)   Linear(64,1) weight (out x in)
    b4_ref: (1, 1)
    o_ref : (1, T)    lane-dense output slab
    """
    # MXU dots at full f32 precision (reference is HIGHEST-precision; default
    # bf16 MXU passes would blow the 1e-5 tolerance).
    dot = lambda a, b: jnp.dot(a, b,
                               preferred_element_type=jnp.float32,
                               precision=jax.lax.Precision.HIGHEST)

    x = x_ref[...]                                         # (3, T)

    # residual[0..1]: Linear(3,24) + Tanh      -> MXU + EUP
    h = jnp.tanh(dot(w1_ref[...], x) + b1_ref[...])        # (24, T)

    # residual[2] + skip: x + Linear(24,3)(h)  -> MXU + VPU add
    y = x + dot(w2_ref[...], h) + b2_ref[...]              # (3, T)

    # mlp[0..1]: Linear(3,64) + Tanh           -> MXU + EUP
    h2 = jnp.tanh(dot(w3_ref[...], y) + b3_ref[...])       # (64, T)

    # mlp[2]: Linear(64,1)                     -> MXU; lane-dense store
    o_ref[...] = dot(w4_ref[...], h2) + b4_ref[...]        # (1, T)


def torchnet_forward(x, kernel_params, *, tile_n=8192):
    """x: (N, 3) float32 -> (N, 1) float32 via the fused Pallas kernel."""
    w1, b1, w2, b2, w3, b3, w4, b4 = kernel_params
    n = x.shape[0]

    # Lane-aligned batch size; prefer >= 2 grid steps whenever the batch spans
    # more than one 128-lane group so v7x's two TensorCores both get work.
    n_lanes = _round_up(n, 128)
    tile = min(tile_n, max(128, _round_up(pl.cdiv(n_lanes, 2), 128)))
    n_pad = _round_up(n_lanes, tile)

    # TODO(synk): keep x feature-major (3, N) upstream to skip this transpose.
    xt = x.T if x.dtype == jnp.float32 else x.astype(jnp.float32).T  # (3, N)
    if n_pad != n:
        xt = jnp.pad(xt, ((0, 0), (0, n_pad - n)))

    const = lambda i: (0, 0)
    out_t = pl.pallas_call(
        torchnet_kernel,
        out_shape=jax.ShapeDtypeStruct((1, n_pad), jnp.float32),
        grid_spec=pltpu.PrefetchScalarGridSpec(
            num_scalar_prefetch=0,
            grid=(n_pad // tile,),
            in_specs=[
                pl.BlockSpec((3, tile), lambda i: (0, i)),    # x^T batch tile
                pl.BlockSpec((24, 3), const),                 # w1
                pl.BlockSpec((24, 1), const),                 # b1
                pl.BlockSpec((3, 24), const),                 # w2
                pl.BlockSpec((3, 1), const),                  # b2
                pl.BlockSpec((64, 3), const),                 # w3
                pl.BlockSpec((64, 1), const),                 # b3
                pl.BlockSpec((1, 64), const),                 # w4
                pl.BlockSpec((1, 1), const),                  # b4
            ],
            out_specs=pl.BlockSpec((1, tile), lambda i: (0, i)),
        ),
        compiler_params=pltpu.CompilerParams(
            dimension_semantics=("parallel",),
            vmem_limit_bytes=32 * 1024 * 1024,   # safe for large tiles on v5e too
        ),
    )(xt, w1, b1, w2, b2, w3, b3, w4, b4)

    # (1, n_pad) -> (n_pad, 1) is a free reshape of the lane-dense slab.
    return out_t.reshape(n_pad, 1)[:n]


def init_params(key):
    """torch.nn.Linear-style init: weight (out,in), bias (out,),
    both ~ U(-1/sqrt(fan_in), 1/sqrt(fan_in))."""
    def linear(k, fan_in, fan_out):
        kw, kb = jax.random.split(k)
        bound = 1.0 / math.sqrt(fan_in)
        w = jax.random.uniform(kw, (fan_out, fan_in), jnp.float32, -bound, bound)
        b = jax.random.uniform(kb, (fan_out,), jnp.float32, -bound, bound)
        return w, b

    k1, k2, k3, k4 = jax.random.split(key, 4)
    return (linear(k1, 3, 24),    # residual[0]
            linear(k2, 24, 3),    # residual[2]
            linear(k3, 3, 64),    # mlp[0]
            linear(k4, 64, 1))    # mlp[2]


def pack_kernel_params(torch_params):
    """Re-layout torch-convention params into the kernel's VMEM-friendly shapes.
    Weights stay in torch (out, in) layout — that is exactly the MXU LHS shape."""
    (w1, b1), (w2, b2), (w3, b3), (w4, b4) = torch_params
    return (
        w1, b1.reshape(24, 1),    # (24,3), (24,1)
        w2, b2.reshape(3, 1),     # (3,24), (3,1)
        w3, b3.reshape(64, 1),    # (64,3), (64,1)
        w4, b4.reshape(1, 1),     # (1,64), (1,1)
    )


def torchnet_reference(x, torch_params):
    """Pure-JAX reference of the PyTorch forward pass (highest-precision dots)."""
    (w1, b1), (w2, b2), (w3, b3), (w4, b4) = torch_params
    dot = lambda a, b: jnp.dot(a, b, precision=jax.lax.Precision.HIGHEST)
    h = jnp.tanh(dot(x, w1.T) + b1)
    residual = dot(h, w2.T) + b2
    y = x + residual
    h2 = jnp.tanh(dot(y, w3.T) + b3)
    return dot(h2, w4.T) + b4


if __name__ == "__main__":
    key = jax.random.PRNGKey(0)
    k_params, k_x1, k_x2 = jax.random.split(key, 3)

    torch_params = init_params(k_params)
    kernel_params = pack_kernel_params(torch_params)

    # Small case (single 128-lane tile, padded lanes).
    x_small = jax.random.normal(k_x1, (8, 3), dtype=jnp.float32)
    out_small = jax.block_until_ready(torchnet_forward(x_small, kernel_params))
    ref_small = torchnet_reference(x_small, torch_params)
    assert out_small.shape == (8, 1), out_small.shape
    assert jnp.allclose(out_small, ref_small, atol=1e-5, rtol=1e-5)

    # Multi-step grid case (exercises padding + >=2 grid steps / v7x sharding).
    x_big = jax.random.normal(k_x2, (300, 3), dtype=jnp.float32)
    out_big = jax.block_until_ready(torchnet_forward(x_big, kernel_params))
    ref_big = torchnet_reference(x_big, torch_params)
    assert out_big.shape == (300, 1), out_big.shape
    assert jnp.allclose(out_big, ref_big, atol=1e-5, rtol=1e-5)

    print("KERNEL_OK")
</pallas_src>

<mosaic_0001>
module attributes {stable_mosaic.version = 11 : i64} {
  func.func @torchnet_kernel(%arg0: i32, %arg1: memref<3x128xf32, #tpu.memory_space<vmem>>, %arg2: memref<24x3xf32, #tpu.memory_space<vmem>>, %arg3: memref<24x1xf32, #tpu.memory_space<vmem>>, %arg4: memref<3x24xf32, #tpu.memory_space<vmem>>, %arg5: memref<3x1xf32, #tpu.memory_space<vmem>>, %arg6: memref<64x3xf32, #tpu.memory_space<vmem>>, %arg7: memref<64x1xf32, #tpu.memory_space<vmem>>, %arg8: memref<1x64xf32, #tpu.memory_space<vmem>>, %arg9: memref<1x1xf32, #tpu.memory_space<vmem>>, %arg10: memref<1x128xf32, #tpu.memory_space<vmem>>) attributes {dimension_semantics = [#tpu.dimension_semantics<parallel>], iteration_bounds = array<i64: 1>, scalar_prefetch = 0 : i64, scratch_operands = 0 : i64, tpu.core_type = #tpu.core_type<tc>, window_params = [{transform_indices = @transform_0, window_bounds = array<i64: 3, 128>}, {pipeline_mode = #tpu.pipeline_mode<synchronous>, transform_indices = @transform_1, window_bounds = array<i64: 24, 3>}, {pipeline_mode = #tpu.pipeline_mode<synchronous>, transform_indices = @transform_2, window_bounds = array<i64: 24, 1>}, {pipeline_mode = #tpu.pipeline_mode<synchronous>, transform_indices = @transform_3, window_bounds = array<i64: 3, 24>}, {pipeline_mode = #tpu.pipeline_mode<synchronous>, transform_indices = @transform_4, window_bounds = array<i64: 3, 1>}, {pipeline_mode = #tpu.pipeline_mode<synchronous>, transform_indices = @transform_5, window_bounds = array<i64: 64, 3>}, {pipeline_mode = #tpu.pipeline_mode<synchronous>, transform_indices = @transform_6, window_bounds = array<i64: 64, 1>}, {pipeline_mode = #tpu.pipeline_mode<synchronous>, transform_indices = @transform_7, window_bounds = array<i64: 1, 64>}, {pipeline_mode = #tpu.pipeline_mode<synchronous>, transform_indices = @transform_8, window_bounds = array<i64: 1, 1>}, {transform_indices = @transform_9, window_bounds = array<i64: 1, 128>}]} {
    %c0 = arith.constant 0 : index
    %c0_0 = arith.constant 0 : index
    %0 = vector.load %arg1[%c0, %c0_0] : memref<3x128xf32, #tpu.memory_space<vmem>>, vector<3x128xf32>
    %c0_1 = arith.constant 0 : index
    %c0_2 = arith.constant 0 : index
    %1 = vector.load %arg2[%c0_1, %c0_2] : memref<24x3xf32, #tpu.memory_space<vmem>>, vector<24x3xf32>
    %cst = arith.constant dense<0.000000e+00> : vector<24x128xf32>
    %2 = tpu.matmul %1, %0, %cst {dimension_numbers = #tpu.dot_dimension_numbers<[1], [0], [0], [1], [0, 0, 1, 1], [], []>, precision = #tpu.contract_precision<fp32>} : vector<24x3xf32>, vector<3x128xf32>, vector<24x128xf32> -> vector<24x128xf32>
    %c0_3 = arith.constant 0 : index
    %c0_4 = arith.constant 0 : index
    %3 = vector.load %arg3[%c0_3, %c0_4] : memref<24x1xf32, #tpu.memory_space<vmem>>, vector<24x1xf32>
    %4 = vector.broadcast %3 : vector<24x1xf32> to vector<24x128xf32>
    %5 = arith.addf %2, %4 : vector<24x128xf32>
    %6 = math.tanh %5 : vector<24x128xf32>
    %c0_5 = arith.constant 0 : index
    %c0_6 = arith.constant 0 : index
    %7 = vector.load %arg4[%c0_5, %c0_6] : memref<3x24xf32, #tpu.memory_space<vmem>>, vector<3x24xf32>
    %cst_7 = arith.constant dense<0.000000e+00> : vector<3x128xf32>
    %8 = tpu.matmul %7, %6, %cst_7 {dimension_numbers = #tpu.dot_dimension_numbers<[1], [0], [0], [1], [0, 0, 1, 1], [], []>, precision = #tpu.contract_precision<fp32>} : vector<3x24xf32>, vector<24x128xf32>, vector<3x128xf32> -> vector<3x128xf32>
    %9 = arith.addf %0, %8 : vector<3x128xf32>
    %c0_8 = arith.constant 0 : index
    %c0_9 = arith.constant 0 : index
    %10 = vector.load %arg5[%c0_8, %c0_9] : memref<3x1xf32, #tpu.memory_space<vmem>>, vector<3x1xf32>
    %11 = vector.broadcast %10 : vector<3x1xf32> to vector<3x128xf32>
    %12 = arith.addf %9, %11 : vector<3x128xf32>
    %c0_10 = arith.constant 0 : index
    %c0_11 = arith.constant 0 : index
    %13 = vector.load %arg6[%c0_10, %c0_11] : memref<64x3xf32, #tpu.memory_space<vmem>>, vector<64x3xf32>
    %cst_12 = arith.constant dense<0.000000e+00> : vector<64x128xf32>
    %14 = tpu.matmul %13, %12, %cst_12 {dimension_numbers = #tpu.dot_dimension_numbers<[1], [0], [0], [1], [0, 0, 1, 1], [], []>, precision = #tpu.contract_precision<fp32>} : vector<64x3xf32>, vector<3x128xf32>, vector<64x128xf32> -> vector<64x128xf32>
    %c0_13 = arith.constant 0 : index
    %c0_14 = arith.constant 0 : index
    %15 = vector.load %arg7[%c0_13, %c0_14] : memref<64x1xf32, #tpu.memory_space<vmem>>, vector<64x1xf32>
    %16 = vector.broadcast %15 : vector<64x1xf32> to vector<64x128xf32>
    %17 = arith.addf %14, %16 : vector<64x128xf32>
    %18 = math.tanh %17 : vector<64x128xf32>
    %c0_15 = arith.constant 0 : index
    %c0_16 = arith.constant 0 : index
    %19 = vector.load %arg8[%c0_15, %c0_16] : memref<1x64xf32, #tpu.memory_space<vmem>>, vector<1x64xf32>
    %cst_17 = arith.constant dense<0.000000e+00> : vector<1x128xf32>
    %20 = tpu.matmul %19, %18, %cst_17 {dimension_numbers = #tpu.dot_dimension_numbers<[1], [0], [0], [1], [0, 0, 1, 1], [], []>, precision = #tpu.contract_precision<fp32>} : vector<1x64xf32>, vector<64x128xf32>, vector<1x128xf32> -> vector<1x128xf32>
    %c0_18 = arith.constant 0 : index
    %c0_19 = arith.constant 0 : index
    %21 = vector.load %arg9[%c0_18, %c0_19] : memref<1x1xf32, #tpu.memory_space<vmem>>, vector<1x1xf32>
    %22 = vector.broadcast %21 : vector<1x1xf32> to vector<1x128xf32>
    %23 = arith.addf %20, %22 : vector<1x128xf32>
    %c0_20 = arith.constant 0 : index
    %c0_21 = arith.constant 0 : index
    %24 = vector.load %arg10[%c0_20, %c0_21] : memref<1x128xf32, #tpu.memory_space<vmem>>, vector<1x128xf32>
    tpu.vector_store %arg10[%c0_20, %c0_21], %23 {strides = array<i32>} : memref<1x128xf32, #tpu.memory_space<vmem>>, vector<1x128xf32>,
    return
  }
  func.func @transform_0(%arg0: i32) -> (i32, i32) {
    %c0_i32 = arith.constant 0 : i32
    %c0_i32_0 = arith.constant 0 : i32
    return %c0_i32, %arg0 : i32, i32
  }
  func.func @transform_1(%arg0: i32) -> (i32, i32) {
    %c0_i32 = arith.constant 0 : i32
    %c0_i32_0 = arith.constant 0 : i32
    %c0_i32_1 = arith.constant 0 : i32
    return %c0_i32, %c0_i32_0 : i32, i32
  }
  func.func @transform_2(%arg0: i32) -> (i32, i32) {
    %c0_i32 = arith.constant 0 : i32
    %c0_i32_0 = arith.constant 0 : i32
    %c0_i32_1 = arith.constant 0 : i32
    return %c0_i32, %c0_i32_0 : i32, i32
  }
  func.func @transform_3(%arg0: i32) -> (i32, i32) {
    %c0_i32 = arith.constant 0 : i32
    %c0_i32_0 = arith.constant 0 : i32
    %c0_i32_1 = arith.constant 0 : i32
    return %c0_i32, %c0_i32_0 : i32, i32
  }
  func.func @transform_4(%arg0: i32) -> (i32, i32) {
    %c0_i32 = arith.constant 0 : i32
    %c0_i32_0 = arith.constant 0 : i32
    %c0_i32_1 = arith.constant 0 : i32
    return %c0_i32, %c0_i32_0 : i32, i32
  }
  func.func @transform_5(%arg0: i32) -> (i32, i32) {
    %c0_i32 = arith.constant 0 : i32
    %c0_i32_0 = arith.constant 0 : i32
    %c0_i32_1 = arith.constant 0 : i32
    return %c0_i32, %c0_i32_0 : i32, i32
  }
  func.func @transform_6(%arg0: i32) -> (i32, i32) {
    %c0_i32 = arith.constant 0 : i32
    %c0_i32_0 = arith.constant 0 : i32
    %c0_i32_1 = arith.constant 0 : i32
    return %c0_i32, %c0_i32_0 : i32, i32
  }
  func.func @transform_7(%arg0: i32) -> (i32, i32) {
    %c0_i32 = arith.constant 0 : i32
    %c0_i32_0 = arith.constant 0 : i32
    %c0_i32_1 = arith.constant 0 : i32
    return %c0_i32, %c0_i32_0 : i32, i32
  }
  func.func @transform_8(%arg0: i32) -> (i32, i32) {
    %c0_i32 = arith.constant 0 : i32
    %c0_i32_0 = arith.constant 0 : i32
    %c0_i32_1 = arith.constant 0 : i32
    return %c0_i32, %c0_i32_0 : i32, i32
  }
  func.func @transform_9(%arg0: i32) -> (i32, i32) {
    %c0_i32 = arith.constant 0 : i32
    %c0_i32_0 = arith.constant 0 : i32
    return %c0_i32, %arg0 : i32, i32
  }
}

</mosaic_0001>

<llo_original>
// kernel: tpu_custom_call.1
$region0: #{tpu_custom_call.1}
  #allocation0 [shape = 'u32[]', space=smem, size = 0x4, offset = 0x4, fixed_abs, tag = 'smem constant byte address 0x4 - core index']
  #allocation1 [shape = 'u32[144,128]{1,0:T(1,128)}', space=vmem, size = 0x12000, scoped, tag = 'internal scratch']
  #allocation2 [shape = 'f32[1,1]{1,0:T(1,128)S(1)}', space=vmem, size = 0x200, scoped, tag = 'scoped memory for tpu_custom_call.1']
  %s0 = inlined_call_operand.vmem [shape: f32[3,128], index: 0, kind: input, shape index: {}]
  %s1 = inlined_call_operand.vmem [shape: f32[24,3], index: 1, kind: input, shape index: {}]
  %s2 = inlined_call_operand.vmem [shape: f32[24,1], index: 2, kind: input, shape index: {}]
  %s3 = inlined_call_operand.vmem [shape: f32[3,24], index: 3, kind: input, shape index: {}]
  %s4 = inlined_call_operand.vmem [shape: f32[3,1], index: 4, kind: input, shape index: {}]
  %s5 = inlined_call_operand.vmem [shape: f32[64,3], index: 5, kind: input, shape index: {}]
  %s6 = inlined_call_operand.vmem [shape: f32[64,1], index: 6, kind: input, shape index: {}]
  %s7 = inlined_call_operand.vmem [shape: f32[1,64], index: 7, kind: input, shape index: {}]
  %s8 = inlined_call_operand.<no memory space> [shape: f32[1,1], index: 8, kind: input, shape index: {}]
  %s9 = inlined_call_operand.hbm [shape: f32[1,128], index: 9, kind: output, shape index: {}]
  %s10 = sld [smem:[#allocation0]]
  $region46: #{tpu_custom_call.1} parent=0
    _
  %s12 = ssub.s32 1, %s10
  %s13 = scalar_select 0, %s12, %s10
  %v14 = vstv %s8
  %15 = vst [vmem:[#allocation2] sm:$0x1] %v14
  $region1: #{tpu_custom_call.1} parent=0
    #allocation3 [shape = 'u8[512]{0}', space=vmem, size = 0x400, scoped, tag = 'output window, operand 0, single buffered']
    #allocation4 [shape = 's32[1]{0}', space=sflag, size = 0x4, scoped, tag = 'scoped memory for tpu_custom_call.1']
    %16 = vsyncpa [#allocation4], 0
    // Predicated region
    $region2: #{tpu_custom_call.1} parent=1 // pred_check
      _
    $region3: #{tpu_custom_call.1} parent=1 // pred_check_branch
      %18 = sbr.rel (0) target = $region5
    $region4: #{tpu_custom_call.1} parent=1 // pred_region
      _
    $region5: #{tpu_custom_call.1} parent=1 // pred_fallthru
      _
    // Predicated region
    $region6: #{tpu_custom_call.1} parent=1 // pred_check
      _
    $region7: #{tpu_custom_call.1} parent=1 // pred_check_branch
      %20 = sbr.rel (0) target = $region9
    $region8: #{tpu_custom_call.1} parent=1 // pred_region
      _
    $region9: #{tpu_custom_call.1} parent=1 // pred_fallthru
      _
    // Predicated region
    $region10: #{tpu_custom_call.1} parent=1 // pred_check
      _
    $region11: #{tpu_custom_call.1} parent=1 // pred_check_branch
      %22 = sbr.rel (0) target = $region13
    $region12: #{tpu_custom_call.1} parent=1 // pred_region
      _
    $region13: #{tpu_custom_call.1} parent=1 // pred_fallthru
      _
    // Predicated region
    $region14: #{tpu_custom_call.1} parent=1 // pred_check
      _
    $region15: #{tpu_custom_call.1} parent=1 // pred_check_branch
      %24 = sbr.rel (0) target = $region17
    $region16: #{tpu_custom_call.1} parent=1 // pred_region
      _
    $region17: #{tpu_custom_call.1} parent=1 // pred_fallthru
      _
    // Predicated region
    $region18: #{tpu_custom_call.1} parent=1 // pred_check
      _
    $region19: #{tpu_custom_call.1} parent=1 // pred_check_branch
      %26 = sbr.rel (0) target = $region21
    $region20: #{tpu_custom_call.1} parent=1 // pred_region
      _
    $region21: #{tpu_custom_call.1} parent=1 // pred_fallthru
      _
    // Predicated region
    $region22: #{tpu_custom_call.1} parent=1 // pred_check
      _
    $region23: #{tpu_custom_call.1} parent=1 // pred_check_branch
      %28 = sbr.rel (0) target = $region25
    $region24: #{tpu_custom_call.1} parent=1 // pred_region
      _
    $region25: #{tpu_custom_call.1} parent=1 // pred_fallthru
      _
    // Predicated region
    $region26: #{tpu_custom_call.1} parent=1 // pred_check
      _
    $region27: #{tpu_custom_call.1} parent=1 // pred_check_branch
      %30 = sbr.rel (0) target = $region29
    $region28: #{tpu_custom_call.1} parent=1 // pred_region
      _
    $region29: #{tpu_custom_call.1} parent=1 // pred_fallthru
      _
    // Predicated region
    $region30: #{tpu_custom_call.1} parent=1 // pred_check
      _
    $region31: #{tpu_custom_call.1} parent=1 // pred_check_branch
      %32 = sbr.rel (0) target = $region33
    $region32: #{tpu_custom_call.1} parent=1 // pred_region
      _
    $region33: #{tpu_custom_call.1} parent=1 // pred_fallthru
      _
    // Predicated region
    $region34: #{tpu_custom_call.1} parent=1 // pred_check
      _
    $region35: #{tpu_custom_call.1} parent=1 // pred_check_branch
      %34 = sbr.rel (0) target = $region37
    $region36: #{tpu_custom_call.1} parent=1 // pred_region
      _
    $region37: #{tpu_custom_call.1} parent=1 // pred_fallthru
      _
    %v35 = vld [vmem:[%s0] sm:$0x7]
    %v36 = vld [vmem:[%s1] sm:$0xff]
    %v37 = vld [vmem:[%s1 + $0x8] sm:$0xff]
    %v38 = vld [vmem:[%s1 + $0x10] sm:$0xff]
    %v39 = vld [vmem:[%s2] sm:$0xff]
    %v40 = vld [vmem:[%s2 + $0x8] sm:$0xff]
    %v41 = vld [vmem:[%s2 + $0x10] sm:$0xff]
    %43 = vset.pattern.permute.xlu0 0
    %44 = vperm.xlu0 %43, %v39
    %v45 = vpop.permute.xlu0 %44
    %48 = vset.pattern.permute.xlu0 0
    %49 = vperm.xlu0 %48, %v40
    %v50 = vpop.permute.xlu0 %49
    %53 = vset.pattern.permute.xlu0 0
    %54 = vperm.xlu0 %53, %v41
    %v55 = vpop.permute.xlu0 %54
    %vm57 = vcmask 23552
    %v59 = vsel %vm57, %v36, 0
    %v62 = vsel %vm57, %v37, 0
    %v65 = vsel %vm57, %v38, 0
    %vm67 = vcmask 1042432
    %v69 = vsel %vm67, %v35, 0
    %71 = vmatprep.subr.mxu0 0.0
    %v72 = vand.u32 %v69, 4294901760
    %73 = vmatpush1.msra.mxu0 %v72
    %74 = vmatprep.subr.mxu0 0.0
    %75 = vmatpush1.msra.mxu0 0.0
    %76 = vmatprep.subr.mxu0 0.0
    %77 = vmatpush1.msra.mxu0 0.0
    %78 = vmatprep.subr.mxu0 0.0
    %79 = vmatpush1.msra.mxu0 0.0
    %80 = vmatprep.subr.mxu0 0.0
    %81 = vmatpush1.msra.mxu0 0.0
    %82 = vmatprep.subr.mxu0 0.0
    %83 = vmatpush1.msra.mxu0 0.0
    %84 = vmatprep.subr.mxu0 0.0
    %85 = vmatpush1.msra.mxu0 0.0
    %86 = vmatprep.subr.mxu0 0.0
    %87 = vmatpush1.msra.mxu0 0.0
    %88 = vmatprep.subr.mxu0 0.0
    %89 = vmatpush1.msra.mxu0 0.0
    %90 = vmatprep.subr.mxu0 0.0
    %91 = vmatpush1.msra.mxu0 0.0
    %92 = vmatprep.subr.mxu0 0.0
    %93 = vmatpush1.msra.mxu0 0.0
    %94 = vmatprep.subr.mxu0 0.0
    %95 = vmatpush1.msra.mxu0 0.0
    %96 = vmatprep.subr.mxu0 0.0
    %97 = vmatpush1.msra.mxu0 0.0
    %98 = vmatprep.subr.mxu0 0.0
    %99 = vmatpush1.msra.mxu0 0.0
    %100 = vmatprep.subr.mxu0 0.0
    %101 = vmatpush1.msra.mxu0 0.0
    %102 = vmatprep.subr.mxu0 0.0
    %103 = vmatpush1.msra.mxu0 0.0
    %104 = vmatprep.subr.mxu0 0.0
    %105 = vmatpush1.msra.mxu0 0.0
    %106 = vmatprep.subr.mxu0 0.0
    %107 = vmatpush1.msra.mxu0 0.0
    %108 = vmatprep.subr.mxu0 0.0
    %109 = vmatpush1.msra.mxu0 0.0
    %110 = vmatprep.subr.mxu0 0.0
    %111 = vmatpush1.msra.mxu0 0.0
    %112 = vmatprep.subr.mxu0 0.0
    %113 = vmatpush1.msra.mxu0 0.0
    %114 = vmatprep.subr.mxu0 0.0
    %115 = vmatpush1.msra.mxu0 0.0
    %116 = vmatprep.subr.mxu0 0.0
    %117 = vmatpush1.msra.mxu0 0.0
    %118 = vmatprep.subr.mxu0 0.0
    %119 = vmatpush1.msra.mxu0 0.0
    %120 = vmatprep.subr.mxu0 0.0
    %121 = vmatpush1.msra.mxu0 0.0
    %122 = vmatprep.subr.mxu0 0.0
    %123 = vmatpush1.msra.mxu0 0.0
    %124 = vmatprep.subr.mxu0 0.0
    %125 = vmatpush1.msra.mxu0 0.0
    %126 = vmatprep.subr.mxu0 0.0
    %127 = vmatpush1.msra.mxu0 0.0
    %128 = vmatprep.subr.mxu0 0.0
    %129 = vmatpush1.msra.mxu0 0.0
    %130 = vmatprep.subr.mxu0 0.0
    %131 = vmatpush1.msra.mxu0 0.0
    %132 = vmatprep.subr.mxu0 0.0
    %133 = vmatpush1.msra.mxu0 0.0
    %134 = vmatprep.subr.mxu0 0.0
    %135 = vmatpush1.msra.mxu0 0.0
    %136 = vmatprep.mubr.f32.mxu0 0.0
    %v137 = vand.u32 %v59, 4294901760
    %v138 = vsub.f32 %v59, %v137
    %v139 = vand.u32 %v138, 4294901760
    %v140 = vsub.f32 %v138, %v139
    %v141 = vand.u32 %v140, 4294901760
    %142 = vmatmul.mubr.f32.gmra.mrb[0].mxu0 %v141
    %v143 = vpop.f32.mrb[0].mxu0
    %v144 = vadd.f32 %v45, %v143
    %v145 = vpop.f32.mrb[0].mxu0
    %146 = vmatprep.mubr.f32.mxu0 0.0
    %v147 = vand.u32 %v62, 4294901760
    %v148 = vsub.f32 %v62, %v147
    %v149 = vand.u32 %v148, 4294901760
    %v150 = vsub.f32 %v148, %v149
    %v151 = vand.u32 %v150, 4294901760
    %152 = vmatmul.mubr.f32.gmra.mrb[0].mxu0 %v151
    %v153 = vpop.f32.mrb[0].mxu0
    %v154 = vadd.f32 %v50, %v153
    %v155 = vpop.f32.mrb[0].mxu0
    %156 = vmatprep.mubr.f32.mxu0 0.0
    %v157 = vand.u32 %v65, 4294901760
    %v158 = vsub.f32 %v65, %v157
    %v159 = vand.u32 %v158, 4294901760
    %v160 = vsub.f32 %v158, %v159
    %v161 = vand.u32 %v160, 4294901760
    %162 = vmatmul.mubr.f32.gmra.mrb[0].mxu0 %v161
    %v163 = vpop.f32.mrb[0].mxu0
    %v164 = vadd.f32 %v55, %v163
    %v165 = vpop.f32.mrb[0].mxu0
    %166 = vdwg.mxu0
    %167 = vmatprep.subr.mxu0 0.0
    %v168 = vand.u32 %v69, 4294901760
    %v169 = vsub.f32 %v69, %v168
    %v170 = vand.u32 %v169, 4294901760
    %v171 = vsub.f32 %v169, %v170
    %v172 = vand.u32 %v171, 4294901760
    %173 = vmatpush1.msra.mxu0 %v172
    %174 = vmatprep.subr.mxu0 0.0
    %175 = vmatpush1.msra.mxu0 0.0
    %176 = vmatprep.subr.mxu0 0.0
    %177 = vmatpush1.msra.mxu0 0.0
    %178 = vmatprep.subr.mxu0 0.0
    %179 = vmatpush1.msra.mxu0 0.0
    %180 = vmatprep.subr.mxu0 0.0
    %181 = vmatpush1.msra.mxu0 0.0
    %182 = vmatprep.subr.mxu0 0.0
    %183 = vmatpush1.msra.mxu0 0.0
    %184 = vmatprep.subr.mxu0 0.0
    %185 = vmatpush1.msra.mxu0 0.0
    %186 = vmatprep.subr.mxu0 0.0
    %187 = vmatpush1.msra.mxu0 0.0
    %188 = vmatprep.subr.mxu0 0.0
    %189 = vmatpush1.msra.mxu0 0.0
    %190 = vmatprep.subr.mxu0 0.0
    %191 = vmatpush1.msra.mxu0 0.0
    %192 = vmatprep.subr.mxu0 0.0
    %193 = vmatpush1.msra.mxu0 0.0
    %194 = vmatprep.subr.mxu0 0.0
    %195 = vmatpush1.msra.mxu0 0.0
    %196 = vmatprep.subr.mxu0 0.0
    %197 = vmatpush1.msra.mxu0 0.0
    %198 = vmatprep.subr.mxu0 0.0
    %199 = vmatpush1.msra.mxu0 0.0
    %200 = vmatprep.subr.mxu0 0.0
    %201 = vmatpush1.msra.mxu0 0.0
    %202 = vmatprep.subr.mxu0 0.0
    %203 = vmatpush1.msra.mxu0 0.0
    %204 = vmatprep.subr.mxu0 0.0
    %205 = vmatpush1.msra.mxu0 0.0
    %206 = vmatprep.subr.mxu0 0.0
    %207 = vmatpush1.msra.mxu0 0.0
    %208 = vmatprep.subr.mxu0 0.0
    %209 = vmatpush1.msra.mxu0 0.0
    %210 = vmatprep.subr.mxu0 0.0
    %211 = vmatpush1.msra.mxu0 0.0
    %212 = vmatprep.subr.mxu0 0.0
    %213 = vmatpush1.msra.mxu0 0.0
    %214 = vmatprep.subr.mxu0 0.0
    %215 = vmatpush1.msra.mxu0 0.0
    %216 = vmatprep.subr.mxu0 0.0
    %217 = vmatpush1.msra.mxu0 0.0
    %218 = vmatprep.subr.mxu0 0.0
    %219 = vmatpush1.msra.mxu0 0.0
    %220 = vmatprep.subr.mxu0 0.0
    %221 = vmatpush1.msra.mxu0 0.0
    %222 = vmatprep.subr.mxu0 0.0
    %223 = vmatpush1.msra.mxu0 0.0
    %224 = vmatprep.subr.mxu0 0.0
    %225 = vmatpush1.msra.mxu0 0.0
    %226 = vmatprep.subr.mxu0 0.0
    %227 = vmatpush1.msra.mxu0 0.0
    %228 = vmatprep.subr.mxu0 0.0
    %229 = vmatpush1.msra.mxu0 0.0
    %230 = vmatprep.subr.mxu0 0.0
    %231 = vmatpush1.msra.mxu0 0.0
    %232 = vmatprep.subr.mxu0 0.0
    %233 = vmatpush1.msra.mxu0 0.0
    %234 = vmatprep.subr.mxu0 0.0
    %235 = vmatpush1.msra.mxu0 0.0
    %236 = vmatprep.mubr.f32.mxu0 0.0
    %v237 = vand.u32 %v59, 4294901760
    %238 = vmatmul.mubr.f32.gmra.mrb[0].mxu0 %v237
    %v239 = vpop.f32.mrb[0].mxu0
    %v240 = vadd.f32 %v144, %v239
    %v241 = vpop.f32.mrb[0].mxu0
    %242 = vmatprep.mubr.f32.mxu0 0.0
    %v243 = vand.u32 %v62, 4294901760
    %244 = vmatmul.mubr.f32.gmra.mrb[0].mxu0 %v243
    %v245 = vpop.f32.mrb[0].mxu0
    %v246 = vadd.f32 %v154, %v245
    %v247 = vpop.f32.mrb[0].mxu0
    %248 = vmatprep.mubr.f32.mxu0 0.0
    %v249 = vand.u32 %v65, 4294901760
    %250 = vmatmul.mubr.f32.gmra.mrb[0].mxu0 %v249
    %v251 = vpop.f32.mrb[0].mxu0
    %v252 = vadd.f32 %v164, %v251
    %v253 = vpop.f32.mrb[0].mxu0
    %254 = vdwg.mxu0
    %255 = vmatprep.subr.mxu0 0.0
    %v256 = vand.u32 %v69, 4294901760
    %v257 = vsub.f32 %v69, %v256
    %258 = vmatpush1.msra.mxu0 %v257
    %259 = vmatprep.subr.mxu0 0.0
    %260 = vmatpush1.msra.mxu0 0.0
    %261 = vmatprep.subr.mxu0 0.0
    %262 = vmatpush1.msra.mxu0 0.0
    %263 = vmatprep.subr.mxu0 0.0
    %264 = vmatpush1.msra.mxu0 0.0
    %265 = vmatprep.subr.mxu0 0.0
    %266 = vmatpush1.msra.mxu0 0.0
    %267 = vmatprep.subr.mxu0 0.0
    %268 = vmatpush1.msra.mxu0 0.0
    %269 = vmatprep.subr.mxu0 0.0
    %270 = vmatpush1.msra.mxu0 0.0
    %271 = vmatprep.subr.mxu0 0.0
    %272 = vmatpush1.msra.mxu0 0.0
    %273 = vmatprep.subr.mxu0 0.0
    %274 = vmatpush1.msra.mxu0 0.0
    %275 = vmatprep.subr.mxu0 0.0
    %276 = vmatpush1.msra.mxu0 0.0
    %277 = vmatprep.subr.mxu0 0.0
    %278 = vmatpush1.msra.mxu0 0.0
    %279 = vmatprep.subr.mxu0 0.0
    %280 = vmatpush1.msra.mxu0 0.0
    %281 = vmatprep.subr.mxu0 0.0
    %282 = vmatpush1.msra.mxu0 0.0
    %283 = vmatprep.subr.mxu0 0.0
    %284 = vmatpush1.msra.mxu0 0.0
    %285 = vmatprep.subr.mxu0 0.0
    %286 = vmatpush1.msra.mxu0 0.0
    %287 = vmatprep.subr.mxu0 0.0
    %288 = vmatpush1.msra.mxu0 0.0
    %289 = vmatprep.subr.mxu0 0.0
    %290 = vmatpush1.msra.mxu0 0.0
    %291 = vmatprep.subr.mxu0 0.0
    %292 = vmatpush1.msra.mxu0 0.0
    %293 = vmatprep.subr.mxu0 0.0
    %294 = vmatpush1.msra.mxu0 0.0
    %295 = vmatprep.subr.mxu0 0.0
    %296 = vmatpush1.msra.mxu0 0.0
    %297 = vmatprep.subr.mxu0 0.0
    %298 = vmatpush1.msra.mxu0 0.0
    %299 = vmatprep.subr.mxu0 0.0
    %300 = vmatpush1.msra.mxu0 0.0
    %301 = vmatprep.subr.mxu0 0.0
    %302 = vmatpush1.msra.mxu0 0.0
    %303 = vmatprep.subr.mxu0 0.0
    %304 = vmatpush1.msra.mxu0 0.0
    %305 = vmatprep.subr.mxu0 0.0
    %306 = vmatpush1.msra.mxu0 0.0
    %307 = vmatprep.subr.mxu0 0.0
    %308 = vmatpush1.msra.mxu0 0.0
    %309 = vmatprep.subr.mxu0 0.0
    %310 = vmatpush1.msra.mxu0 0.0
    %311 = vmatprep.subr.mxu0 0.0
    %312 = vmatpush1.msra.mxu0 0.0
    %313 = vmatprep.subr.mxu0 0.0
    %314 = vmatpush1.msra.mxu0 0.0
    %315 = vmatprep.subr.mxu0 0.0
    %316 = vmatpush1.msra.mxu0 0.0
    %317 = vmatprep.subr.mxu0 0.0
    %318 = vmatpush1.msra.mxu0 0.0
    %319 = vmatprep.subr.mxu0 0.0
    %320 = vmatpush1.msra.mxu0 0.0
    %321 = vmatprep.mubr.f32.mxu0 0.0
    %v322 = vand.u32 %v59, 4294901760
    %v323 = vsub.f32 %v59, %v322
    %324 = vmatmul.mubr.f32.gmra.mrb[0].mxu0 %v323
    %v325 = vpop.f32.mrb[0].mxu0
    %v326 = vadd.f32 %v240, %v325
    %v327 = vpop.f32.mrb[0].mxu0
    %328 = vmatprep.mubr.f32.mxu0 0.0
    %v329 = vand.u32 %v62, 4294901760
    %v330 = vsub.f32 %v62, %v329
    %331 = vmatmul.mubr.f32.gmra.mrb[0].mxu0 %v330
    %v332 = vpop.f32.mrb[0].mxu0
    %v333 = vadd.f32 %v246, %v332
    %v334 = vpop.f32.mrb[0].mxu0
    %335 = vmatprep.mubr.f32.mxu0 0.0
    %v336 = vand.u32 %v65, 4294901760
    %v337 = vsub.f32 %v65, %v336
    %338 = vmatmul.mubr.f32.gmra.mrb[0].mxu0 %v337
    %v339 = vpop.f32.mrb[0].mxu0
    %v340 = vadd.f32 %v252, %v339
    %v341 = vpop.f32.mrb[0].mxu0
    %342 = vdwg.mxu0
    %343 = vmatprep.subr.mxu0 0.0
    %v344 = vand.u32 %v69, 4294901760
    %345 = vmatpush1.msra.mxu0 %v344
    %346 = vmatprep.subr.mxu0 0.0
    %347 = vmatpush1.msra.mxu0 0.0
    %348 = vmatprep.subr.mxu0 0.0
    %349 = vmatpush1.msra.mxu0 0.0
    %350 = vmatprep.subr.mxu0 0.0
    %351 = vmatpush1.msra.mxu0 0.0
    %352 = vmatprep.subr.mxu0 0.0
    %353 = vmatpush1.msra.mxu0 0.0
    %354 = vmatprep.subr.mxu0 0.0
    %355 = vmatpush1.msra.mxu0 0.0
    %356 = vmatprep.subr.mxu0 0.0
    %357 = vmatpush1.msra.mxu0 0.0
    %358 = vmatprep.subr.mxu0 0.0
    %359 = vmatpush1.msra.mxu0 0.0
    %360 = vmatprep.subr.mxu0 0.0
    %361 = vmatpush1.msra.mxu0 0.0
    %362 = vmatprep.subr.mxu0 0.0
    %363 = vmatpush1.msra.mxu0 0.0
    %364 = vmatprep.subr.mxu0 0.0
    %365 = vmatpush1.msra.mxu0 0.0
    %366 = vmatprep.subr.mxu0 0.0
    %367 = vmatpush1.msra.mxu0 0.0
    %368 = vmatprep.subr.mxu0 0.0
    %369 = vmatpush1.msra.mxu0 0.0
    %370 = vmatprep.subr.mxu0 0.0
    %371 = vmatpush1.msra.mxu0 0.0
    %372 = vmatprep.subr.mxu0 0.0
    %373 = vmatpush1.msra.mxu0 0.0
    %374 = vmatprep.subr.mxu0 0.0
    %375 = vmatpush1.msra.mxu0 0.0
    %376 = vmatprep.subr.mxu0 0.0
    %377 = vmatpush1.msra.mxu0 0.0
    %378 = vmatprep.subr.mxu0 0.0
    %379 = vmatpush1.msra.mxu0 0.0
    %380 = vmatprep.subr.mxu0 0.0
    %381 = vmatpush1.msra.mxu0 0.0
    %382 = vmatprep.subr.mxu0 0.0
    %383 = vmatpush1.msra.mxu0 0.0
    %384 = vmatprep.subr.mxu0 0.0
    %385 = vmatpush1.msra.mxu0 0.0
    %386 = vmatprep.subr.mxu0 0.0
    %387 = vmatpush1.msra.mxu0 0.0
    %388 = vmatprep.subr.mxu0 0.0
    %389 = vmatpush1.msra.mxu0 0.0
    %390 = vmatprep.subr.mxu0 0.0
    %391 = vmatpush1.msra.mxu0 0.0
    %392 = vmatprep.subr.mxu0 0.0
    %393 = vmatpush1.msra.mxu0 0.0
    %394 = vmatprep.subr.mxu0 0.0
    %395 = vmatpush1.msra.mxu0 0.0
    %396 = vmatprep.subr.mxu0 0.0
    %397 = vmatpush1.msra.mxu0 0.0
    %398 = vmatprep.subr.mxu0 0.0
    %399 = vmatpush1.msra.mxu0 0.0
    %400 = vmatprep.subr.mxu0 0.0
    %401 = vmatpush1.msra.mxu0 0.0
    %402 = vmatprep.subr.mxu0 0.0
    %403 = vmatpush1.msra.mxu0 0.0
    %404 = vmatprep.subr.mxu0 0.0
    %405 = vmatpush1.msra.mxu0 0.0
    %406 = vmatprep.subr.mxu0 0.0
    %407 = vmatpush1.msra.mxu0 0.0
    %408 = vmatprep.mubr.f32.mxu0 0.0
    %v409 = vand.u32 %v59, 4294901760
    %v410 = vsub.f32 %v59, %v409
    %v411 = vand.u32 %v410, 4294901760
    %412 = vmatmul.mubr.f32.gmra.mrb[0].mxu0 %v411
    %v413 = vpop.f32.mrb[0].mxu0
    %v414 = vadd.f32 %v326, %v413
    %v415 = vpop.f32.mrb[0].mxu0
    %416 = vmatprep.mubr.f32.mxu0 0.0
    %v417 = vand.u32 %v62, 4294901760
    %v418 = vsub.f32 %v62, %v417
    %v419 = vand.u32 %v418, 4294901760
    %420 = vmatmul.mubr.f32.gmra.mrb[0].mxu0 %v419
    %v421 = vpop.f32.mrb[0].mxu0
    %v422 = vadd.f32 %v333, %v421
    %v423 = vpop.f32.mrb[0].mxu0
    %424 = vmatprep.mubr.f32.mxu0 0.0
    %v425 = vand.u32 %v65, 4294901760
    %v426 = vsub.f32 %v65, %v425
    %v427 = vand.u32 %v426, 4294901760
    %428 = vmatmul.mubr.f32.gmra.mrb[0].mxu0 %v427
    %v429 = vpop.f32.mrb[0].mxu0
    %v430 = vadd.f32 %v340, %v429
    %v431 = vpop.f32.mrb[0].mxu0
    %432 = vdwg.mxu0
    %433 = vmatprep.subr.mxu0 0.0
    %v434 = vand.u32 %v69, 4294901760
    %v435 = vsub.f32 %v69, %v434
    %v436 = vand.u32 %v435, 4294901760
    %437 = vmatpush1.msra.mxu0 %v436
    %438 = vmatprep.subr.mxu0 0.0
    %439 = vmatpush1.msra.mxu0 0.0
    %440 = vmatprep.subr.mxu0 0.0
    %441 = vmatpush1.msra.mxu0 0.0
    %442 = vmatprep.subr.mxu0 0.0
    %443 = vmatpush1.msra.mxu0 0.0
    %444 = vmatprep.subr.mxu0 0.0
    %445 = vmatpush1.msra.mxu0 0.0
    %446 = vmatprep.subr.mxu0 0.0
    %447 = vmatpush1.msra.mxu0 0.0
    %448 = vmatprep.subr.mxu0 0.0
    %449 = vmatpush1.msra.mxu0 0.0
    %450 = vmatprep.subr.mxu0 0.0
    %451 = vmatpush1.msra.mxu0 0.0
    %452 = vmatprep.subr.mxu0 0.0
    %453 = vmatpush1.msra.mxu0 0.0
    %454 = vmatprep.subr.mxu0 0.0
    %455 = vmatpush1.msra.mxu0 0.0
    %456 = vmatprep.subr.mxu0 0.0
    %457 = vmatpush1.msra.mxu0 0.0
    %458 = vmatprep.subr.mxu0 0.0
    %459 = vmatpush1.msra.mxu0 0.0
    %460 = vmatprep.subr.mxu0 0.0
    %461 = vmatpush1.msra.mxu0 0.0
    %462 = vmatprep.subr.mxu0 0.0
    %463 = vmatpush1.msra.mxu0 0.0
    %464 = vmatprep.subr.mxu0 0.0
    %465 = vmatpush1.msra.mxu0 0.0
    %466 = vmatprep.subr.mxu0 0.0
    %467 = vmatpush1.msra.mxu0 0.0
    %468 = vmatprep.subr.mxu0 0.0
    %469 = vmatpush1.msra.mxu0 0.0
    %470 = vmatprep.subr.mxu0 0.0
    %471 = vmatpush1.msra.mxu0 0.0
    %472 = vmatprep.subr.mxu0 0.0
    %473 = vmatpush1.msra.mxu0 0.0
    %474 = vmatprep.subr.mxu0 0.0
    %475 = vmatpush1.msra.mxu0 0.0
    %476 = vmatprep.subr.mxu0 0.0
    %477 = vmatpush1.msra.mxu0 0.0
    %478 = vmatprep.subr.mxu0 0.0
    %479 = vmatpush1.msra.mxu0 0.0
    %480 = vmatprep.subr.mxu0 0.0
    %481 = vmatpush1.msra.mxu0 0.0
    %482 = vmatprep.subr.mxu0 0.0
    %483 = vmatpush1.msra.mxu0 0.0
    %484 = vmatprep.subr.mxu0 0.0
    %485 = vmatpush1.msra.mxu0 0.0
    %486 = vmatprep.subr.mxu0 0.0
    %487 = vmatpush1.msra.mxu0 0.0
    %488 = vmatprep.subr.mxu0 0.0
    %489 = vmatpush1.msra.mxu0 0.0
    %490 = vmatprep.subr.mxu0 0.0
    %491 = vmatpush1.msra.mxu0 0.0
    %492 = vmatprep.subr.mxu0 0.0
    %493 = vmatpush1.msra.mxu0 0.0
    %494 = vmatprep.subr.mxu0 0.0
    %495 = vmatpush1.msra.mxu0 0.0
    %496 = vmatprep.subr.mxu0 0.0
    %497 = vmatpush1.msra.mxu0 0.0
    %498 = vmatprep.subr.mxu0 0.0
    %499 = vmatpush1.msra.mxu0 0.0
    %500 = vmatprep.mubr.f32.mxu0 0.0
    %v501 = vand.u32 %v59, 4294901760
    %502 = vmatmul.mubr.f32.gmra.mrb[0].mxu0 %v501
    %v503 = vpop.f32.mrb[0].mxu0
    %v504 = vadd.f32 %v414, %v503
    %v505 = vpop.f32.mrb[0].mxu0
    %506 = vmatprep.mubr.f32.mxu0 0.0
    %v507 = vand.u32 %v62, 4294901760
    %508 = vmatmul.mubr.f32.gmra.mrb[0].mxu0 %v507
    %v509 = vpop.f32.mrb[0].mxu0
    %v510 = vadd.f32 %v422, %v509
    %v511 = vpop.f32.mrb[0].mxu0
    %512 = vmatprep.mubr.f32.mxu0 0.0
    %v513 = vand.u32 %v65, 4294901760
    %514 = vmatmul.mubr.f32.gmra.mrb[0].mxu0 %v513
    %v515 = vpop.f32.mrb[0].mxu0
    %v516 = vadd.f32 %v430, %v515
    %v517 = vpop.f32.mrb[0].mxu0
    %518 = vdwg.mxu0
    %519 = vmatprep.subr.mxu0 0.0
    %v520 = vand.u32 %v69, 4294901760
    %521 = vmatpush1.msra.mxu0 %v520
    %522 = vmatprep.subr.mxu0 0.0
    %523 = vmatpush1.msra.mxu0 0.0
    %524 = vmatprep.subr.mxu0 0.0
    %525 = vmatpush1.msra.mxu0 0.0
    %526 = vmatprep.subr.mxu0 0.0
    %527 = vmatpush1.msra.mxu0 0.0
    %528 = vmatprep.subr.mxu0 0.0
    %529 = vmatpush1.msra.mxu0 0.0
    %530 = vmatprep.subr.mxu0 0.0
    %531 = vmatpush1.msra.mxu0 0.0
    %532 = vmatprep.subr.mxu0 0.0
    %533 = vmatpush1.msra.mxu0 0.0
    %534 = vmatprep.subr.mxu0 0.0
    %535 = vmatpush1.msra.mxu0 0.0
    %536 = vmatprep.subr.mxu0 0.0
    %537 = vmatpush1.msra.mxu0 0.0
    %538 = vmatprep.subr.mxu0 0.0
    %539 = vmatpush1.msra.mxu0 0.0
    %540 = vmatprep.subr.mxu0 0.0
    %541 = vmatpush1.msra.mxu0 0.0
    %542 = vmatprep.subr.mxu0 0.0
    %543 = vmatpush1.msra.mxu0 0.0
    %544 = vmatprep.subr.mxu0 0.0
    %545 = vmatpush1.msra.mxu0 0.0
    %546 = vmatprep.subr.mxu0 0.0
    %547 = vmatpush1.msra.mxu0 0.0
    %548 = vmatprep.subr.mxu0 0.0
    %549 = vmatpush1.msra.mxu0 0.0
    %550 = vmatprep.subr.mxu0 0.0
    %551 = vmatpush1.msra.mxu0 0.0
    %552 = vmatprep.subr.mxu0 0.0
    %553 = vmatpush1.msra.mxu0 0.0
    %554 = vmatprep.subr.mxu0 0.0
    %555 = vmatpush1.msra.mxu0 0.0
    %556 = vmatprep.subr.mxu0 0.0
    %557 = vmatpush1.msra.mxu0 0.0
    %558 = vmatprep.subr.mxu0 0.0
    %559 = vmatpush1.msra.mxu0 0.0
    %560 = vmatprep.subr.mxu0 0.0
    %561 = vmatpush1.msra.mxu0 0.0
    %562 = vmatprep.subr.mxu0 0.0
    %563 = vmatpush1.msra.mxu0 0.0
    %564 = vmatprep.subr.mxu0 0.0
    %565 = vmatpush1.msra.mxu0 0.0
    %566 = vmatprep.subr.mxu0 0.0
    %567 = vmatpush1.msra.mxu0 0.0
    %568 = vmatprep.subr.mxu0 0.0
    %569 = vmatpush1.msra.mxu0 0.0
    %570 = vmatprep.subr.mxu0 0.0
    %571 = vmatpush1.msra.mxu0 0.0
    %572 = vmatprep.subr.mxu0 0.0
    %573 = vmatpush1.msra.mxu0 0.0
    %574 = vmatprep.subr.mxu0 0.0
    %575 = vmatpush1.msra.mxu0 0.0
    %576 = vmatprep.subr.mxu0 0.0
    %577 = vmatpush1.msra.mxu0 0.0
    %578 = vmatprep.subr.mxu0 0.0
    %579 = vmatpush1.msra.mxu0 0.0
    %580 = vmatprep.subr.mxu0 0.0
    %581 = vmatpush1.msra.mxu0 0.0
    %582 = vmatprep.subr.mxu0 0.0
    %583 = vmatpush1.msra.mxu0 0.0
    %584 = vmatprep.mubr.f32.mxu0 0.0
    %v585 = vand.u32 %v59, 4294901760
    %586 = vmatmul.mubr.f32.gmra.mrb[0].mxu0 %v585
    %v587 = vpop.f32.mrb[0].mxu0
    %v588 = vadd.f32 %v504, %v587
    %v589 = vpop.f32.mrb[0].mxu0
    %590 = vmatprep.mubr.f32.mxu0 0.0
    %v591 = vand.u32 %v62, 4294901760
    %592 = vmatmul.mubr.f32.gmra.mrb[0].mxu0 %v591
    %v593 = vpop.f32.mrb[0].mxu0
    %v594 = vadd.f32 %v510, %v593
    %v595 = vpop.f32.mrb[0].mxu0
    %596 = vmatprep.mubr.f32.mxu0 0.0
    %v597 = vand.u32 %v65, 4294901760
    %598 = vmatmul.mubr.f32.gmra.mrb[0].mxu0 %v597
    %v599 = vpop.f32.mrb[0].mxu0
    %v600 = vadd.f32 %v516, %v599
    %v601 = vpop.f32.mrb[0].mxu0
    %602 = vdwg.mxu0
    %v603 = vtanh.pop %v588
    %v604 = vtanh.pop %v594
    %v605 = vtanh.pop %v600
    %v606 = vld [vmem:[%s3] sm:$0x7]
    %vm607 = vcmask 195584
    %v609 = vsel %vm607, %v606, 0
    %611 = vmatprep.subr.mxu0 0.0
    %v612 = vand.u32 %v603, 4294901760
    %613 = vmatpush1.msra.mxu0 %v612
    %614 = vmatprep.subr.mxu0 0.0
    %v615 = vand.u32 %v604, 4294901760
    %616 = vmatpush1.msra.mxu0 %v615
    %617 = vmatprep.subr.mxu0 0.0
    %v618 = vand.u32 %v605, 4294901760
    %619 = vmatpush1.msra.mxu0 %v618
    %620 = vmatprep.subr.mxu0 0.0
    %621 = vmatpush1.msra.mxu0 0.0
    %622 = vmatprep.subr.mxu0 0.0
    %623 = vmatpush1.msra.mxu0 0.0
    %624 = vmatprep.subr.mxu0 0.0
    %625 = vmatpush1.msra.mxu0 0.0
    %626 = vmatprep.subr.mxu0 0.0
    %627 = vmatpush1.msra.mxu0 0.0
    %628 = vmatprep.subr.mxu0 0.0
    %629 = vmatpush1.msra.mxu0 0.0
    %630 = vmatprep.subr.mxu0 0.0
    %631 = vmatpush1.msra.mxu0 0.0
    %632 = vmatprep.subr.mxu0 0.0
    %633 = vmatpush1.msra.mxu0 0.0
    %634 = vmatprep.subr.mxu0 0.0
    %635 = vmatpush1.msra.mxu0 0.0
    %636 = vmatprep.subr.mxu0 0.0
    %637 = vmatpush1.msra.mxu0 0.0
    %638 = vmatprep.subr.mxu0 0.0
    %639 = vmatpush1.msra.mxu0 0.0
    %640 = vmatprep.subr.mxu0 0.0
    %641 = vmatpush1.msra.mxu0 0.0
    %642 = vmatprep.subr.mxu0 0.0
    %643 = vmatpush1.msra.mxu0 0.0
    %644 = vmatprep.subr.mxu0 0.0
    %645 = vmatpush1.msra.mxu0 0.0
    %646 = vmatprep.subr.mxu0 0.0
    %647 = vmatpush1.msra.mxu0 0.0
    %648 = vmatprep.subr.mxu0 0.0
    %649 = vmatpush1.msra.mxu0 0.0
    %650 = vmatprep.subr.mxu0 0.0
    %651 = vmatpush1.msra.mxu0 0.0
    %652 = vmatprep.subr.mxu0 0.0
    %653 = vmatpush1.msra.mxu0 0.0
    %654 = vmatprep.subr.mxu0 0.0
    %655 = vmatpush1.msra.mxu0 0.0
    %656 = vmatprep.subr.mxu0 0.0
    %657 = vmatpush1.msra.mxu0 0.0
    %658 = vmatprep.subr.mxu0 0.0
    %659 = vmatpush1.msra.mxu0 0.0
    %660 = vmatprep.subr.mxu0 0.0
    %661 = vmatpush1.msra.mxu0 0.0
    %662 = vmatprep.subr.mxu0 0.0
    %663 = vmatpush1.msra.mxu0 0.0
    %664 = vmatprep.subr.mxu0 0.0
    %665 = vmatpush1.msra.mxu0 0.0
    %666 = vmatprep.subr.mxu0 0.0
    %667 = vmatpush1.msra.mxu0 0.0
    %668 = vmatprep.subr.mxu0 0.0
    %669 = vmatpush1.msra.mxu0 0.0
    %670 = vmatprep.subr.mxu0 0.0
    %671 = vmatpush1.msra.mxu0 0.0
    %672 = vmatprep.subr.mxu0 0.0
    %673 = vmatpush1.msra.mxu0 0.0
    %674 = vmatprep.subr.mxu0 0.0
    %675 = vmatpush1.msra.mxu0 0.0
    %676 = vmatprep.subr.mxu0 0.0
    %677 = vmatpush1.msra.mxu0 0.0
    %678 = vmatprep.mubr.f32.mxu0 0.0
    %v679 = vand.u32 %v609, 4294901760
    %v680 = vsub.f32 %v609, %v679
    %v681 = vand.u32 %v680, 4294901760
    %v682 = vsub.f32 %v680, %v681
    %v683 = vand.u32 %v682, 4294901760
    %684 = vmatmul.mubr.f32.gmra.mrb[0].mxu0 %v683
    %v685 = vpop.f32.mrb[0].mxu0
    %v686 = vadd.f32 0.0, %v685
    %v687 = vpop.f32.mrb[0].mxu0
    %688 = vdwg.mxu0
    %689 = vmatprep.subr.mxu0 0.0
    %v690 = vand.u32 %v603, 4294901760
    %v691 = vsub.f32 %v603, %v690
    %v692 = vand.u32 %v691, 4294901760
    %v693 = vsub.f32 %v691, %v692
    %v694 = vand.u32 %v693, 4294901760
    %695 = vmatpush1.msra.mxu0 %v694
    %696 = vmatprep.subr.mxu0 0.0
    %v697 = vand.u32 %v604, 4294901760
    %v698 = vsub.f32 %v604, %v697
    %v699 = vand.u32 %v698, 4294901760
    %v700 = vsub.f32 %v698, %v699
    %v701 = vand.u32 %v700, 4294901760
    %702 = vmatpush1.msra.mxu0 %v701
    %703 = vmatprep.subr.mxu0 0.0
    %v704 = vand.u32 %v605, 4294901760
    %v705 = vsub.f32 %v605, %v704
    %v706 = vand.u32 %v705, 4294901760
    %v707 = vsub.f32 %v705, %v706
    %v708 = vand.u32 %v707, 4294901760
    %709 = vmatpush1.msra.mxu0 %v708
    %710 = vmatprep.subr.mxu0 0.0
    %711 = vmatpush1.msra.mxu0 0.0
    %712 = vmatprep.subr.mxu0 0.0
    %713 = vmatpush1.msra.mxu0 0.0
    %714 = vmatprep.subr.mxu0 0.0
    %715 = vmatpush1.msra.mxu0 0.0
    %716 = vmatprep.subr.mxu0 0.0
    %717 = vmatpush1.msra.mxu0 0.0
    %718 = vmatprep.subr.mxu0 0.0
    %719 = vmatpush1.msra.mxu0 0.0
    %720 = vmatprep.subr.mxu0 0.0
    %721 = vmatpush1.msra.mxu0 0.0
    %722 = vmatprep.subr.mxu0 0.0
    %723 = vmatpush1.msra.mxu0 0.0
    %724 = vmatprep.subr.mxu0 0.0
    %725 = vmatpush1.msra.mxu0 0.0
    %726 = vmatprep.subr.mxu0 0.0
    %727 = vmatpush1.msra.mxu0 0.0
    %728 = vmatprep.subr.mxu0 0.0
    %729 = vmatpush1.msra.mxu0 0.0
    %730 = vmatprep.subr.mxu0 0.0
    %731 = vmatpush1.msra.mxu0 0.0
    %732 = vmatprep.subr.mxu0 0.0
    %733 = vmatpush1.msra.mxu0 0.0
    %734 = vmatprep.subr.mxu0 0.0
    %735 = vmatpush1.msra.mxu0 0.0
    %736 = vmatprep.subr.mxu0 0.0
    %737 = vmatpush1.msra.mxu0 0.0
    %738 = vmatprep.subr.mxu0 0.0
    %739 = vmatpush1.msra.mxu0 0.0
    %740 = vmatprep.subr.mxu0 0.0
    %741 = vmatpush1.msra.mxu0 0.0
    %742 = vmatprep.subr.mxu0 0.0
    %743 = vmatpush1.msra.mxu0 0.0
    %744 = vmatprep.subr.mxu0 0.0
    %745 = vmatpush1.msra.mxu0 0.0
    %746 = vmatprep.subr.mxu0 0.0
    %747 = vmatpush1.msra.mxu0 0.0
    %748 = vmatprep.subr.mxu0 0.0
    %749 = vmatpush1.msra.mxu0 0.0
    %750 = vmatprep.subr.mxu0 0.0
    %751 = vmatpush1.msra.mxu0 0.0
    %752 = vmatprep.subr.mxu0 0.0
    %753 = vmatpush1.msra.mxu0 0.0
    %754 = vmatprep.subr.mxu0 0.0
    %755 = vmatpush1.msra.mxu0 0.0
    %756 = vmatprep.subr.mxu0 0.0
    %757 = vmatpush1.msra.mxu0 0.0
    %758 = vmatprep.subr.mxu0 0.0
    %759 = vmatpush1.msra.mxu0 0.0
    %760 = vmatprep.subr.mxu0 0.0
    %761 = vmatpush1.msra.mxu0 0.0
    %762 = vmatprep.subr.mxu0 0.0
    %763 = vmatpush1.msra.mxu0 0.0
    %764 = vmatprep.subr.mxu0 0.0
    %765 = vmatpush1.msra.mxu0 0.0
    %766 = vmatprep.subr.mxu0 0.0
    %767 = vmatpush1.msra.mxu0 0.0
    %768 = vmatprep.mubr.f32.mxu0 0.0
    %v769 = vand.u32 %v609, 4294901760
    %770 = vmatmul.mubr.f32.gmra.mrb[0].mxu0 %v769
    %v771 = vpop.f32.mrb[0].mxu0
    %v772 = vadd.f32 %v686, %v771
    %v773 = vpop.f32.mrb[0].mxu0
    %774 = vdwg.mxu0
    %775 = vmatprep.subr.mxu0 0.0
    %v776 = vand.u32 %v603, 4294901760
    %v777 = vsub.f32 %v603, %v776
    %778 = vmatpush1.msra.mxu0 %v777
    %779 = vmatprep.subr.mxu0 0.0
    %v780 = vand.u32 %v604, 4294901760
    %v781 = vsub.f32 %v604, %v780
    %782 = vmatpush1.msra.mxu0 %v781
    %783 = vmatprep.subr.mxu0 0.0
    %v784 = vand.u32 %v605, 4294901760
    %v785 = vsub.f32 %v605, %v784
    %786 = vmatpush1.msra.mxu0 %v785
    %787 = vmatprep.subr.mxu0 0.0
    %788 = vmatpush1.msra.mxu0 0.0
    %789 = vmatprep.subr.mxu0 0.0
    %790 = vmatpush1.msra.mxu0 0.0
    %791 = vmatprep.subr.mxu0 0.0
    %792 = vmatpush1.msra.mxu0 0.0
    %793 = vmatprep.subr.mxu0 0.0
    %794 = vmatpush1.msra.mxu0 0.0
    %795 = vmatprep.subr.mxu0 0.0
    %796 = vmatpush1.msra.mxu0 0.0
    %797 = vmatprep.subr.mxu0 0.0
    %798 = vmatpush1.msra.mxu0 0.0
    %799 = vmatprep.subr.mxu0 0.0
    %800 = vmatpush1.msra.mxu0 0.0
    %801 = vmatprep.subr.mxu0 0.0
    %802 = vmatpush1.msra.mxu0 0.0
    %803 = vmatprep.subr.mxu0 0.0
    %804 = vmatpush1.msra.mxu0 0.0
    %805 = vmatprep.subr.mxu0 0.0
    %806 = vmatpush1.msra.mxu0 0.0
    %807 = vmatprep.subr.mxu0 0.0
    %808 = vmatpush1.msra.mxu0 0.0
    %809 = vmatprep.subr.mxu0 0.0
    %810 = vmatpush1.msra.mxu0 0.0
    %811 = vmatprep.subr.mxu0 0.0
    %812 = vmatpush1.msra.mxu0 0.0
    %813 = vmatprep.subr.mxu0 0.0
    %814 = vmatpush1.msra.mxu0 0.0
    %815 = vmatprep.subr.mxu0 0.0
    %816 = vmatpush1.msra.mxu0 0.0
    %817 = vmatprep.subr.mxu0 0.0
    %818 = vmatpush1.msra.mxu0 0.0
    %819 = vmatprep.subr.mxu0 0.0
    %820 = vmatpush1.msra.mxu0 0.0
    %821 = vmatprep.subr.mxu0 0.0
    %822 = vmatpush1.msra.mxu0 0.0
    %823 = vmatprep.subr.mxu0 0.0
    %824 = vmatpush1.msra.mxu0 0.0
    %825 = vmatprep.subr.mxu0 0.0
    %826 = vmatpush1.msra.mxu0 0.0
    %827 = vmatprep.subr.mxu0 0.0
    %828 = vmatpush1.msra.mxu0 0.0
    %829 = vmatprep.subr.mxu0 0.0
    %830 = vmatpush1.msra.mxu0 0.0
    %831 = vmatprep.subr.mxu0 0.0
    %832 = vmatpush1.msra.mxu0 0.0
    %833 = vmatprep.subr.mxu0 0.0
    %834 = vmatpush1.msra.mxu0 0.0
    %835 = vmatprep.subr.mxu0 0.0
    %836 = vmatpush1.msra.mxu0 0.0
    %837 = vmatprep.subr.mxu0 0.0
    %838 = vmatpush1.msra.mxu0 0.0
    %839 = vmatprep.subr.mxu0 0.0
    %840 = vmatpush1.msra.mxu0 0.0
    %841 = vmatprep.subr.mxu0 0.0
    %842 = vmatpush1.msra.mxu0 0.0
    %843 = vmatprep.subr.mxu0 0.0
    %844 = vmatpush1.msra.mxu0 0.0
    %845 = vmatprep.mubr.f32.mxu0 0.0
    %v846 = vand.u32 %v609, 4294901760
    %v847 = vsub.f32 %v609, %v846
    %848 = vmatmul.mubr.f32.gmra.mrb[0].mxu0 %v847
    %v849 = vpop.f32.mrb[0].mxu0
    %v850 = vadd.f32 %v772, %v849
    %v851 = vpop.f32.mrb[0].mxu0
    %852 = vdwg.mxu0
    %853 = vmatprep.subr.mxu0 0.0
    %v854 = vand.u32 %v603, 4294901760
    %855 = vmatpush1.msra.mxu0 %v854
    %856 = vmatprep.subr.mxu0 0.0
    %v857 = vand.u32 %v604, 4294901760
    %858 = vmatpush1.msra.mxu0 %v857
    %859 = vmatprep.subr.mxu0 0.0
    %v860 = vand.u32 %v605, 4294901760
    %861 = vmatpush1.msra.mxu0 %v860
    %862 = vmatprep.subr.mxu0 0.0
    %863 = vmatpush1.msra.mxu0 0.0
    %864 = vmatprep.subr.mxu0 0.0
    %865 = vmatpush1.msra.mxu0 0.0
    %866 = vmatprep.subr.mxu0 0.0
    %867 = vmatpush1.msra.mxu0 0.0
    %868 = vmatprep.subr.mxu0 0.0
    %869 = vmatpush1.msra.mxu0 0.0
    %870 = vmatprep.subr.mxu0 0.0
    %871 = vmatpush1.msra.mxu0 0.0
    %872 = vmatprep.subr.mxu0 0.0
    %873 = vmatpush1.msra.mxu0 0.0
    %874 = vmatprep.subr.mxu0 0.0
    %875 = vmatpush1.msra.mxu0 0.0
    %876 = vmatprep.subr.mxu0 0.0
    %877 = vmatpush1.msra.mxu0 0.0
    %878 = vmatprep.subr.mxu0 0.0
    %879 = vmatpush1.msra.mxu0 0.0
    %880 = vmatprep.subr.mxu0 0.0
    %881 = vmatpush1.msra.mxu0 0.0
    %882 = vmatprep.subr.mxu0 0.0
    %883 = vmatpush1.msra.mxu0 0.0
    %884 = vmatprep.subr.mxu0 0.0
    %885 = vmatpush1.msra.mxu0 0.0
    %886 = vmatprep.subr.mxu0 0.0
    %887 = vmatpush1.msra.mxu0 0.0
    %888 = vmatprep.subr.mxu0 0.0
    %889 = vmatpush1.msra.mxu0 0.0
    %890 = vmatprep.subr.mxu0 0.0
    %891 = vmatpush1.msra.mxu0 0.0
    %892 = vmatprep.subr.mxu0 0.0
    %893 = vmatpush1.msra.mxu0 0.0
    %894 = vmatprep.subr.mxu0 0.0
    %895 = vmatpush1.msra.mxu0 0.0
    %896 = vmatprep.subr.mxu0 0.0
    %897 = vmatpush1.msra.mxu0 0.0
    %898 = vmatprep.subr.mxu0 0.0
    %899 = vmatpush1.msra.mxu0 0.0
    %900 = vmatprep.subr.mxu0 0.0
    %901 = vmatpush1.msra.mxu0 0.0
    %902 = vmatprep.subr.mxu0 0.0
    %903 = vmatpush1.msra.mxu0 0.0
    %904 = vmatprep.subr.mxu0 0.0
    %905 = vmatpush1.msra.mxu0 0.0
    %906 = vmatprep.subr.mxu0 0.0
    %907 = vmatpush1.msra.mxu0 0.0
    %908 = vmatprep.subr.mxu0 0.0
    %909 = vmatpush1.msra.mxu0 0.0
    %910 = vmatprep.subr.mxu0 0.0
    %911 = vmatpush1.msra.mxu0 0.0
    %912 = vmatprep.subr.mxu0 0.0
    %913 = vmatpush1.msra.mxu0 0.0
    %914 = vmatprep.subr.mxu0 0.0
    %915 = vmatpush1.msra.mxu0 0.0
    %916 = vmatprep.subr.mxu0 0.0
    %917 = vmatpush1.msra.mxu0 0.0
    %918 = vmatprep.subr.mxu0 0.0
    %919 = vmatpush1.msra.mxu0 0.0
    %920 = vmatprep.mubr.f32.mxu0 0.0
    %v921 = vand.u32 %v609, 4294901760
    %v922 = vsub.f32 %v609, %v921
    %v923 = vand.u32 %v922, 4294901760
    %924 = vmatmul.mubr.f32.gmra.mrb[0].mxu0 %v923
    %v925 = vpop.f32.mrb[0].mxu0
    %v926 = vadd.f32 %v850, %v925
    %v927 = vpop.f32.mrb[0].mxu0
    %928 = vdwg.mxu0
    %929 = vmatprep.subr.mxu0 0.0
    %v930 = vand.u32 %v603, 4294901760
    %v931 = vsub.f32 %v603, %v930
    %v932 = vand.u32 %v931, 4294901760
    %933 = vmatpush1.msra.mxu0 %v932
    %934 = vmatprep.subr.mxu0 0.0
    %v935 = vand.u32 %v604, 4294901760
    %v936 = vsub.f32 %v604, %v935
    %v937 = vand.u32 %v936, 4294901760
    %938 = vmatpush1.msra.mxu0 %v937
    %939 = vmatprep.subr.mxu0 0.0
    %v940 = vand.u32 %v605, 4294901760
    %v941 = vsub.f32 %v605, %v940
    %v942 = vand.u32 %v941, 4294901760
    %943 = vmatpush1.msra.mxu0 %v942
    %944 = vmatprep.subr.mxu0 0.0
    %945 = vmatpush1.msra.mxu0 0.0
    %946 = vmatprep.subr.mxu0 0.0
    %947 = vmatpush1.msra.mxu0 0.0
    %948 = vmatprep.subr.mxu0 0.0
    %949 = vmatpush1.msra.mxu0 0.0
    %950 = vmatprep.subr.mxu0 0.0
    %951 = vmatpush1.msra.mxu0 0.0
    %952 = vmatprep.subr.mxu0 0.0
    %953 = vmatpush1.msra.mxu0 0.0
    %954 = vmatprep.subr.mxu0 0.0
    %955 = vmatpush1.msra.mxu0 0.0
    %956 = vmatprep.subr.mxu0 0.0
    %957 = vmatpush1.msra.mxu0 0.0
    %958 = vmatprep.subr.mxu0 0.0
    %959 = vmatpush1.msra.mxu0 0.0
    %960 = vmatprep.subr.mxu0 0.0
    %961 = vmatpush1.msra.mxu0 0.0
    %962 = vmatprep.subr.mxu0 0.0
    %963 = vmatpush1.msra.mxu0 0.0
    %964 = vmatprep.subr.mxu0 0.0
    %965 = vmatpush1.msra.mxu0 0.0
    %966 = vmatprep.subr.mxu0 0.0
    %967 = vmatpush1.msra.mxu0 0.0
    %968 = vmatprep.subr.mxu0 0.0
    %969 = vmatpush1.msra.mxu0 0.0
    %970 = vmatprep.subr.mxu0 0.0
    %971 = vmatpush1.msra.mxu0 0.0
    %972 = vmatprep.subr.mxu0 0.0
    %973 = vmatpush1.msra.mxu0 0.0
    %974 = vmatprep.subr.mxu0 0.0
    %975 = vmatpush1.msra.mxu0 0.0
    %976 = vmatprep.subr.mxu0 0.0
    %977 = vmatpush1.msra.mxu0 0.0
    %978 = vmatprep.subr.mxu0 0.0
    %979 = vmatpush1.msra.mxu0 0.0
    %980 = vmatprep.subr.mxu0 0.0
    %981 = vmatpush1.msra.mxu0 0.0
    %982 = vmatprep.subr.mxu0 0.0
    %983 = vmatpush1.msra.mxu0 0.0
    %984 = vmatprep.subr.mxu0 0.0
    %985 = vmatpush1.msra.mxu0 0.0
    %986 = vmatprep.subr.mxu0 0.0
    %987 = vmatpush1.msra.mxu0 0.0
    %988 = vmatprep.subr.mxu0 0.0
    %989 = vmatpush1.msra.mxu0 0.0
    %990 = vmatprep.subr.mxu0 0.0
    %991 = vmatpush1.msra.mxu0 0.0
    %992 = vmatprep.subr.mxu0 0.0
    %993 = vmatpush1.msra.mxu0 0.0
    %994 = vmatprep.subr.mxu0 0.0
    %995 = vmatpush1.msra.mxu0 0.0
    %996 = vmatprep.subr.mxu0 0.0
    %997 = vmatpush1.msra.mxu0 0.0
    %998 = vmatprep.subr.mxu0 0.0
    %999 = vmatpush1.msra.mxu0 0.0
    %1000 = vmatprep.subr.mxu0 0.0
    %1001 = vmatpush1.msra.mxu0 0.0
    %1002 = vmatprep.mubr.f32.mxu0 0.0
    %v1003 = vand.u32 %v609, 4294901760
    %1004 = vmatmul.mubr.f32.gmra.mrb[0].mxu0 %v1003
    %v1005 = vpop.f32.mrb[0].mxu0
    %v1006 = vadd.f32 %v926, %v1005
    %v1007 = vpop.f32.mrb[0].mxu0
    %1008 = vdwg.mxu0
    %1009 = vmatprep.subr.mxu0 0.0
    %v1010 = vand.u32 %v603, 4294901760
    %1011 = vmatpush1.msra.mxu0 %v1010
    %1012 = vmatprep.subr.mxu0 0.0
    %v1013 = vand.u32 %v604, 4294901760
    %1014 = vmatpush1.msra.mxu0 %v1013
    %1015 = vmatprep.subr.mxu0 0.0
    %v1016 = vand.u32 %v605, 4294901760
    %1017 = vmatpush1.msra.mxu0 %v1016
    %1018 = vmatprep.subr.mxu0 0.0
    %1019 = vmatpush1.msra.mxu0 0.0
    %1020 = vmatprep.subr.mxu0 0.0
    %1021 = vmatpush1.msra.mxu0 0.0
    %1022 = vmatprep.subr.mxu0 0.0
    %1023 = vmatpush1.msra.mxu0 0.0
    %1024 = vmatprep.subr.mxu0 0.0
    %1025 = vmatpush1.msra.mxu0 0.0
    %1026 = vmatprep.subr.mxu0 0.0
    %1027 = vmatpush1.msra.mxu0 0.0
    %1028 = vmatprep.subr.mxu0 0.0
    %1029 = vmatpush1.msra.mxu0 0.0
    %1030 = vmatprep.subr.mxu0 0.0
    %1031 = vmatpush1.msra.mxu0 0.0
    %1032 = vmatprep.subr.mxu0 0.0
    %1033 = vmatpush1.msra.mxu0 0.0
    %1034 = vmatprep.subr.mxu0 0.0
    %1035 = vmatpush1.msra.mxu0 0.0
    %1036 = vmatprep.subr.mxu0 0.0
    %1037 = vmatpush1.msra.mxu0 0.0
    %1038 = vmatprep.subr.mxu0 0.0
    %1039 = vmatpush1.msra.mxu0 0.0
    %1040 = vmatprep.subr.mxu0 0.0
    %1041 = vmatpush1.msra.mxu0 0.0
    %1042 = vmatprep.subr.mxu0 0.0
    %1043 = vmatpush1.msra.mxu0 0.0
    %1044 = vmatprep.subr.mxu0 0.0
    %1045 = vmatpush1.msra.mxu0 0.0
    %1046 = vmatprep.subr.mxu0 0.0
    %1047 = vmatpush1.msra.mxu0 0.0
    %1048 = vmatprep.subr.mxu0 0.0
    %1049 = vmatpush1.msra.mxu0 0.0
    %1050 = vmatprep.subr.mxu0 0.0
    %1051 = vmatpush1.msra.mxu0 0.0
    %1052 = vmatprep.subr.mxu0 0.0
    %1053 = vmatpush1.msra.mxu0 0.0
    %1054 = vmatprep.subr.mxu0 0.0
    %1055 = vmatpush1.msra.mxu0 0.0
    %1056 = vmatprep.subr.mxu0 0.0
    %1057 = vmatpush1.msra.mxu0 0.0
    %1058 = vmatprep.subr.mxu0 0.0
    %1059 = vmatpush1.msra.mxu0 0.0
    %1060 = vmatprep.subr.mxu0 0.0
    %1061 = vmatpush1.msra.mxu0 0.0
    %1062 = vmatprep.subr.mxu0 0.0
    %1063 = vmatpush1.msra.mxu0 0.0
    %1064 = vmatprep.subr.mxu0 0.0
    %1065 = vmatpush1.msra.mxu0 0.0
    %1066 = vmatprep.subr.mxu0 0.0
    %1067 = vmatpush1.msra.mxu0 0.0
    %1068 = vmatprep.subr.mxu0 0.0
    %1069 = vmatpush1.msra.mxu0 0.0
    %1070 = vmatprep.subr.mxu0 0.0
    %1071 = vmatpush1.msra.mxu0 0.0
    %1072 = vmatprep.subr.mxu0 0.0
    %1073 = vmatpush1.msra.mxu0 0.0
    %1074 = vmatprep.subr.mxu0 0.0
    %1075 = vmatpush1.msra.mxu0 0.0
    %1076 = vmatprep.mubr.f32.mxu0 0.0
    %v1077 = vand.u32 %v609, 4294901760
    %1078 = vmatmul.mubr.f32.gmra.mrb[0].mxu0 %v1077
    %v1079 = vpop.f32.mrb[0].mxu0
    %v1080 = vadd.f32 %v1006, %v1079
    %v1081 = vpop.f32.mrb[0].mxu0
    %1082 = vdwg.mxu0
    %v1083 = vadd.f32 %v35, %v1080
    %v1084 = vld [vmem:[%s4] sm:$0x7]
    %1086 = vset.pattern.permute.xlu0 0
    %1087 = vperm.xlu0 %1086, %v1084
    %v1088 = vpop.permute.xlu0 %1087
    %v1090 = vadd.f32 %v1083, %v1088
    %v1091 = vld [vmem:[%s5] sm:$0xff]
    %v1092 = vld [vmem:[%s5 + $0x8] sm:$0xff]
    %v1093 = vld [vmem:[%s5 + $0x10] sm:$0xff]
    %v1094 = vld [vmem:[%s5 + $0x18] sm:$0xff]
    %v1095 = vld [vmem:[%s5 + $0x20] sm:$0xff]
    %v1096 = vld [vmem:[%s5 + $0x28] sm:$0xff]
    %v1097 = vld [vmem:[%s5 + $0x30] sm:$0xff]
    %v1098 = vld [vmem:[%s5 + $0x38] sm:$0xff]
    %v1099 = vld [vmem:[%s6] sm:$0xff]
    %v1100 = vld [vmem:[%s6 + $0x8] sm:$0xff]
    %v1101 = vld [vmem:[%s6 + $0x10] sm:$0xff]
    %v1102 = vld [vmem:[%s6 + $0x18] sm:$0xff]
    %v1103 = vld [vmem:[%s6 + $0x20] sm:$0xff]
    %v1104 = vld [vmem:[%s6 + $0x28] sm:$0xff]
    %v1105 = vld [vmem:[%s6 + $0x30] sm:$0xff]
    %v1106 = vld [vmem:[%s6 + $0x38] sm:$0xff]
    %1108 = vset.pattern.permute.xlu0 0
    %1109 = vperm.xlu0 %1108, %v1099
    %v1110 = vpop.permute.xlu0 %1109
    %1113 = vset.pattern.permute.xlu0 0
    %1114 = vperm.xlu0 %1113, %v1100
    %v1115 = vpop.permute.xlu0 %1114
    %1118 = vset.pattern.permute.xlu0 0
    %1119 = vperm.xlu0 %1118, %v1101
    %v1120 = vpop.permute.xlu0 %1119
    %1123 = vset.pattern.permute.xlu0 0
    %1124 = vperm.xlu0 %1123, %v1102
    %v1125 = vpop.permute.xlu0 %1124
    %1128 = vset.pattern.permute.xlu0 0
    %1129 = vperm.xlu0 %1128, %v1103
    %v1130 = vpop.permute.xlu0 %1129
    %1133 = vset.pattern.permute.xlu0 0
    %1134 = vperm.xlu0 %1133, %v1104
    %v1135 = vpop.permute.xlu0 %1134
    %1138 = vset.pattern.permute.xlu0 0
    %1139 = vperm.xlu0 %1138, %v1105
    %v1140 = vpop.permute.xlu0 %1139
    %1143 = vset.pattern.permute.xlu0 0
    %1144 = vperm.xlu0 %1143, %v1106
    %v1145 = vpop.permute.xlu0 %1144
    %v1148 = vsel %vm57, %v1091, 0
    %v1151 = vsel %vm57, %v1092, 0
    %v1154 = vsel %vm57, %v1093, 0
    %v1157 = vsel %vm57, %v1094, 0
    %v1160 = vsel %vm57, %v1095, 0
    %v1163 = vsel %vm57, %v1096, 0
    %v1166 = vsel %vm57, %v1097, 0
    %v1169 = vsel %vm57, %v1098, 0
    %v1172 = vsel %vm67, %v1090, 0
    %1174 = vmatprep.subr.mxu0 0.0
    %v1175 = vand.u32 %v1172, 4294901760
    %1176 = vmatpush1.msra.mxu0 %v1175
    %1177 = vmatprep.subr.mxu0 0.0
    %1178 = vmatpush1.msra.mxu0 0.0
    %1179 = vmatprep.subr.mxu0 0.0
    %1180 = vmatpush1.msra.mxu0 0.0
    %1181 = vmatprep.subr.mxu0 0.0
    %1182 = vmatpush1.msra.mxu0 0.0
    %1183 = vmatprep.subr.mxu0 0.0
    %1184 = vmatpush1.msra.mxu0 0.0
    %1185 = vmatprep.subr.mxu0 0.0
    %1186 = vmatpush1.msra.mxu0 0.0
    %1187 = vmatprep.subr.mxu0 0.0
    %1188 = vmatpush1.msra.mxu0 0.0
    %1189 = vmatprep.subr.mxu0 0.0
    %1190 = vmatpush1.msra.mxu0 0.0
    %1191 = vmatprep.subr.mxu0 0.0
    %1192 = vmatpush1.msra.mxu0 0.0
    %1193 = vmatprep.subr.mxu0 0.0
    %1194 = vmatpush1.msra.mxu0 0.0
    %1195 = vmatprep.subr.mxu0 0.0
    %1196 = vmatpush1.msra.mxu0 0.0
    %1197 = vmatprep.subr.mxu0 0.0
    %1198 = vmatpush1.msra.mxu0 0.0
    %1199 = vmatprep.subr.mxu0 0.0
    %1200 = vmatpush1.msra.mxu0 0.0
    %1201 = vmatprep.subr.mxu0 0.0
    %1202 = vmatpush1.msra.mxu0 0.0
    %1203 = vmatprep.subr.mxu0 0.0
    %1204 = vmatpush1.msra.mxu0 0.0
    %1205 = vmatprep.subr.mxu0 0.0
    %1206 = vmatpush1.msra.mxu0 0.0
    %1207 = vmatprep.subr.mxu0 0.0
    %1208 = vmatpush1.msra.mxu0 0.0
    %1209 = vmatprep.subr.mxu0 0.0
    %1210 = vmatpush1.msra.mxu0 0.0
    %1211 = vmatprep.subr.mxu0 0.0
    %1212 = vmatpush1.msra.mxu0 0.0
    %1213 = vmatprep.subr.mxu0 0.0
    %1214 = vmatpush1.msra.mxu0 0.0
    %1215 = vmatprep.subr.mxu0 0.0
    %1216 = vmatpush1.msra.mxu0 0.0
    %1217 = vmatprep.subr.mxu0 0.0
    %1218 = vmatpush1.msra.mxu0 0.0
    %1219 = vmatprep.subr.mxu0 0.0
    %1220 = vmatpush1.msra.mxu0 0.0
    %1221 = vmatprep.subr.mxu0 0.0
    %1222 = vmatpush1.msra.mxu0 0.0
    %1223 = vmatprep.subr.mxu0 0.0
    %1224 = vmatpush1.msra.mxu0 0.0
    %1225 = vmatprep.subr.mxu0 0.0
    %1226 = vmatpush1.msra.mxu0 0.0
    %1227 = vmatprep.subr.mxu0 0.0
    %1228 = vmatpush1.msra.mxu0 0.0
    %1229 = vmatprep.subr.mxu0 0.0
    %1230 = vmatpush1.msra.mxu0 0.0
    %1231 = vmatprep.subr.mxu0 0.0
    %1232 = vmatpush1.msra.mxu0 0.0
    %1233 = vmatprep.subr.mxu0 0.0
    %1234 = vmatpush1.msra.mxu0 0.0
    %1235 = vmatprep.subr.mxu0 0.0
    %1236 = vmatpush1.msra.mxu0 0.0
    %1237 = vmatprep.subr.mxu0 0.0
    %1238 = vmatpush1.msra.mxu0 0.0
    %1239 = vmatprep.mubr.f32.mxu0 0.0
    %v1240 = vand.u32 %v1148, 4294901760
    %v1241 = vsub.f32 %v1148, %v1240
    %v1242 = vand.u32 %v1241, 4294901760
    %v1243 = vsub.f32 %v1241, %v1242
    %v1244 = vand.u32 %v1243, 4294901760
    %1245 = vmatmul.mubr.f32.gmra.mrb[0].mxu0 %v1244
    %v1246 = vpop.f32.mrb[0].mxu0
    %v1247 = vadd.f32 %v1110, %v1246
    %v1248 = vpop.f32.mrb[0].mxu0
    %1249 = vmatprep.mubr.f32.mxu0 0.0
    %v1250 = vand.u32 %v1151, 4294901760
    %v1251 = vsub.f32 %v1151, %v1250
    %v1252 = vand.u32 %v1251, 4294901760
    %v1253 = vsub.f32 %v1251, %v1252
    %v1254 = vand.u32 %v1253, 4294901760
    %1255 = vmatmul.mubr.f32.gmra.mrb[0].mxu0 %v1254
    %v1256 = vpop.f32.mrb[0].mxu0
    %v1257 = vadd.f32 %v1115, %v1256
    %v1258 = vpop.f32.mrb[0].mxu0
    %1259 = vmatprep.mubr.f32.mxu0 0.0
    %v1260 = vand.u32 %v1154, 4294901760
    %v1261 = vsub.f32 %v1154, %v1260
    %v1262 = vand.u32 %v1261, 4294901760
    %v1263 = vsub.f32 %v1261, %v1262
    %v1264 = vand.u32 %v1263, 4294901760
    %1265 = vmatmul.mubr.f32.gmra.mrb[0].mxu0 %v1264
    %v1266 = vpop.f32.mrb[0].mxu0
    %v1267 = vadd.f32 %v1120, %v1266
    %v1268 = vpop.f32.mrb[0].mxu0
    %1269 = vmatprep.mubr.f32.mxu0 0.0
    %v1270 = vand.u32 %v1157, 4294901760
    %v1271 = vsub.f32 %v1157, %v1270
    %v1272 = vand.u32 %v1271, 4294901760
    %v1273 = vsub.f32 %v1271, %v1272
    %v1274 = vand.u32 %v1273, 4294901760
    %1275 = vmatmul.mubr.f32.gmra.mrb[0].mxu0 %v1274
    %v1276 = vpop.f32.mrb[0].mxu0
    %v1277 = vadd.f32 %v1125, %v1276
    %v1278 = vpop.f32.mrb[0].mxu0
    %1279 = vmatprep.mubr.f32.mxu0 0.0
    %v1280 = vand.u32 %v1160, 4294901760
    %v1281 = vsub.f32 %v1160, %v1280
    %v1282 = vand.u32 %v1281, 4294901760
    %v1283 = vsub.f32 %v1281, %v1282
    %v1284 = vand.u32 %v1283, 4294901760
    %1285 = vmatmul.mubr.f32.gmra.mrb[0].mxu0 %v1284
    %v1286 = vpop.f32.mrb[0].mxu0
    %v1287 = vadd.f32 %v1130, %v1286
    %v1288 = vpop.f32.mrb[0].mxu0
    %1289 = vmatprep.mubr.f32.mxu0 0.0
    %v1290 = vand.u32 %v1163, 4294901760
    %v1291 = vsub.f32 %v1163, %v1290
    %v1292 = vand.u32 %v1291, 4294901760
    %v1293 = vsub.f32 %v1291, %v1292
    %v1294 = vand.u32 %v1293, 4294901760
    %1295 = vmatmul.mubr.f32.gmra.mrb[0].mxu0 %v1294
    %v1296 = vpop.f32.mrb[0].mxu0
    %v1297 = vadd.f32 %v1135, %v1296
    %v1298 = vpop.f32.mrb[0].mxu0
    %1299 = vmatprep.mubr.f32.mxu0 0.0
    %v1300 = vand.u32 %v1166, 4294901760
    %v1301 = vsub.f32 %v1166, %v1300
    %v1302 = vand.u32 %v1301, 4294901760
    %v1303 = vsub.f32 %v1301, %v1302
    %v1304 = vand.u32 %v1303, 4294901760
    %1305 = vmatmul.mubr.f32.gmra.mrb[0].mxu0 %v1304
    %v1306 = vpop.f32.mrb[0].mxu0
    %v1307 = vadd.f32 %v1140, %v1306
    %v1308 = vpop.f32.mrb[0].mxu0
    %1309 = vmatprep.mubr.f32.mxu0 0.0
    %v1310 = vand.u32 %v1169, 4294901760
    %v1311 = vsub.f32 %v1169, %v1310
    %v1312 = vand.u32 %v1311, 4294901760
    %v1313 = vsub.f32 %v1311, %v1312
    %v1314 = vand.u32 %v1313, 4294901760
    %1315 = vmatmul.mubr.f32.gmra.mrb[0].mxu0 %v1314
    %v1316 = vpop.f32.mrb[0].mxu0
    %v1317 = vadd.f32 %v1145, %v1316
    %v1318 = vpop.f32.mrb[0].mxu0
    %1319 = vdwg.mxu0
    %1320 = vmatprep.subr.mxu0 0.0
    %v1321 = vand.u32 %v1172, 4294901760
    %v1322 = vsub.f32 %v1172, %v1321
    %v1323 = vand.u32 %v1322, 4294901760
    %v1324 = vsub.f32 %v1322, %v1323
    %v1325 = vand.u32 %v1324, 4294901760
    %1326 = vmatpush1.msra.mxu0 %v1325
    %1327 = vmatprep.subr.mxu0 0.0
    %1328 = vmatpush1.msra.mxu0 0.0
    %1329 = vmatprep.subr.mxu0 0.0
    %1330 = vmatpush1.msra.mxu0 0.0
    %1331 = vmatprep.subr.mxu0 0.0
    %1332 = vmatpush1.msra.mxu0 0.0
    %1333 = vmatprep.subr.mxu0 0.0
    %1334 = vmatpush1.msra.mxu0 0.0
    %1335 = vmatprep.subr.mxu0 0.0
    %1336 = vmatpush1.msra.mxu0 0.0
    %1337 = vmatprep.subr.mxu0 0.0
    %1338 = vmatpush1.msra.mxu0 0.0
    %1339 = vmatprep.subr.mxu0 0.0
    %1340 = vmatpush1.msra.mxu0 0.0
    %1341 = vmatprep.subr.mxu0 0.0
    %1342 = vmatpush1.msra.mxu0 0.0
    %1343 = vmatprep.subr.mxu0 0.0
    %1344 = vmatpush1.msra.mxu0 0.0
    %1345 = vmatprep.subr.mxu0 0.0
    %1346 = vmatpush1.msra.mxu0 0.0
    %1347 = vmatprep.subr.mxu0 0.0
    %1348 = vmatpush1.msra.mxu0 0.0
    %1349 = vmatprep.subr.mxu0 0.0
    %1350 = vmatpush1.msra.mxu0 0.0
    %1351 = vmatprep.subr.mxu0 0.0
    %1352 = vmatpush1.msra.mxu0 0.0
    %1353 = vmatprep.subr.mxu0 0.0
    %1354 = vmatpush1.msra.mxu0 0.0
    %1355 = vmatprep.subr.mxu0 0.0
    %1356 = vmatpush1.msra.mxu0 0.0
    %1357 = vmatprep.subr.mxu0 0.0
    %1358 = vmatpush1.msra.mxu0 0.0
    %1359 = vmatprep.subr.mxu0 0.0
    %1360 = vmatpush1.msra.mxu0 0.0
    %1361 = vmatprep.subr.mxu0 0.0
    %1362 = vmatpush1.msra.mxu0 0.0
    %1363 = vmatprep.subr.mxu0 0.0
    %1364 = vmatpush1.msra.mxu0 0.0
    %1365 = vmatprep.subr.mxu0 0.0
    %1366 = vmatpush1.msra.mxu0 0.0
    %1367 = vmatprep.subr.mxu0 0.0
    %1368 = vmatpush1.msra.mxu0 0.0
    %1369 = vmatprep.subr.mxu0 0.0
    %1370 = vmatpush1.msra.mxu0 0.0
    %1371 = vmatprep.subr.mxu0 0.0
    %1372 = vmatpush1.msra.mxu0 0.0
    %1373 = vmatprep.subr.mxu0 0.0
    %1374 = vmatpush1.msra.mxu0 0.0
    %1375 = vmatprep.subr.mxu0 0.0
    %1376 = vmatpush1.msra.mxu0 0.0
    %1377 = vmatprep.subr.mxu0 0.0
    %1378 = vmatpush1.msra.mxu0 0.0
    %1379 = vmatprep.subr.mxu0 0.0
    %1380 = vmatpush1.msra.mxu0 0.0
    %1381 = vmatprep.subr.mxu0 0.0
    %1382 = vmatpush1.msra.mxu0 0.0
    %1383 = vmatprep.subr.mxu0 0.0
    %1384 = vmatpush1.msra.mxu0 0.0
    %1385 = vmatprep.subr.mxu0 0.0
    %1386 = vmatpush1.msra.mxu0 0.0
    %1387 = vmatprep.subr.mxu0 0.0
    %1388 = vmatpush1.msra.mxu0 0.0
    %1389 = vmatprep.mubr.f32.mxu0 0.0
    %v1390 = vand.u32 %v1148, 4294901760
    %1391 = vmatmul.mubr.f32.gmra.mrb[0].mxu0 %v1390
    %v1392 = vpop.f32.mrb[0].mxu0
    %v1393 = vadd.f32 %v1247, %v1392
    %v1394 = vpop.f32.mrb[0].mxu0
    %1395 = vmatprep.mubr.f32.mxu0 0.0
    %v1396 = vand.u32 %v1151, 4294901760
    %1397 = vmatmul.mubr.f32.gmra.mrb[0].mxu0 %v1396
    %v1398 = vpop.f32.mrb[0].mxu0
    %v1399 = vadd.f32 %v1257, %v1398
    %v1400 = vpop.f32.mrb[0].mxu0
    %1401 = vmatprep.mubr.f32.mxu0 0.0
    %v1402 = vand.u32 %v1154, 4294901760
    %1403 = vmatmul.mubr.f32.gmra.mrb[0].mxu0 %v1402
    %v1404 = vpop.f32.mrb[0].mxu0
    %v1405 = vadd.f32 %v1267, %v1404
    %v1406 = vpop.f32.mrb[0].mxu0
    %1407 = vmatprep.mubr.f32.mxu0 0.0
    %v1408 = vand.u32 %v1157, 4294901760
    %1409 = vmatmul.mubr.f32.gmra.mrb[0].mxu0 %v1408
    %v1410 = vpop.f32.mrb[0].mxu0
    %v1411 = vadd.f32 %v1277, %v1410
    %v1412 = vpop.f32.mrb[0].mxu0
    %1413 = vmatprep.mubr.f32.mxu0 0.0
    %v1414 = vand.u32 %v1160, 4294901760
    %1415 = vmatmul.mubr.f32.gmra.mrb[0].mxu0 %v1414
    %v1416 = vpop.f32.mrb[0].mxu0
    %v1417 = vadd.f32 %v1287, %v1416
    %v1418 = vpop.f32.mrb[0].mxu0
    %1419 = vmatprep.mubr.f32.mxu0 0.0
    %v1420 = vand.u32 %v1163, 4294901760
    %1421 = vmatmul.mubr.f32.gmra.mrb[0].mxu0 %v1420
    %v1422 = vpop.f32.mrb[0].mxu0
    %v1423 = vadd.f32 %v1297, %v1422
    %v1424 = vpop.f32.mrb[0].mxu0
    %1425 = vmatprep.mubr.f32.mxu0 0.0
    %v1426 = vand.u32 %v1166, 4294901760
    %1427 = vmatmul.mubr.f32.gmra.mrb[0].mxu0 %v1426
    %v1428 = vpop.f32.mrb[0].mxu0
    %v1429 = vadd.f32 %v1307, %v1428
    %v1430 = vpop.f32.mrb[0].mxu0
    %1431 = vmatprep.mubr.f32.mxu0 0.0
    %v1432 = vand.u32 %v1169, 4294901760
    %1433 = vmatmul.mubr.f32.gmra.mrb[0].mxu0 %v1432
    %v1434 = vpop.f32.mrb[0].mxu0
    %v1435 = vadd.f32 %v1317, %v1434
    %v1436 = vpop.f32.mrb[0].mxu0
    %1437 = vdwg.mxu0
    %1438 = vmatprep.subr.mxu0 0.0
    %v1439 = vand.u32 %v1172, 4294901760
    %v1440 = vsub.f32 %v1172, %v1439
    %1441 = vmatpush1.msra.mxu0 %v1440
    %1442 = vmatprep.subr.mxu0 0.0
    %1443 = vmatpush1.msra.mxu0 0.0
    %1444 = vmatprep.subr.mxu0 0.0
    %1445 = vmatpush1.msra.mxu0 0.0
    %1446 = vmatprep.subr.mxu0 0.0
    %1447 = vmatpush1.msra.mxu0 0.0
    %1448 = vmatprep.subr.mxu0 0.0
    %1449 = vmatpush1.msra.mxu0 0.0
    %1450 = vmatprep.subr.mxu0 0.0
    %1451 = vmatpush1.msra.mxu0 0.0
    %1452 = vmatprep.subr.mxu0 0.0
    %1453 = vmatpush1.msra.mxu0 0.0
    %1454 = vmatprep.subr.mxu0 0.0
    %1455 = vmatpush1.msra.mxu0 0.0
    %1456 = vmatprep.subr.mxu0 0.0
    %1457 = vmatpush1.msra.mxu0 0.0
    %1458 = vmatprep.subr.mxu0 0.0
    %1459 = vmatpush1.msra.mxu0 0.0
    %1460 = vmatprep.subr.mxu0 0.0
    %1461 = vmatpush1.msra.mxu0 0.0
    %1462 = vmatprep.subr.mxu0 0.0
    %1463 = vmatpush1.msra.mxu0 0.0
    %1464 = vmatprep.subr.mxu0 0.0
    %1465 = vmatpush1.msra.mxu0 0.0
    %1466 = vmatprep.subr.mxu0 0.0
    %1467 = vmatpush1.msra.mxu0 0.0
    %1468 = vmatprep.subr.mxu0 0.0
    %1469 = vmatpush1.msra.mxu0 0.0
    %1470 = vmatprep.subr.mxu0 0.0
    %1471 = vmatpush1.msra.mxu0 0.0
    %1472 = vmatprep.subr.mxu0 0.0
    %1473 = vmatpush1.msra.mxu0 0.0
    %1474 = vmatprep.subr.mxu0 0.0
    %1475 = vmatpush1.msra.mxu0 0.0
    %1476 = vmatprep.subr.mxu0 0.0
    %1477 = vmatpush1.msra.mxu0 0.0
    %1478 = vmatprep.subr.mxu0 0.0
    %1479 = vmatpush1.msra.mxu0 0.0
    %1480 = vmatprep.subr.mxu0 0.0
    %1481 = vmatpush1.msra.mxu0 0.0
    %1482 = vmatprep.subr.mxu0 0.0
    %1483 = vmatpush1.msra.mxu0 0.0
    %1484 = vmatprep.subr.mxu0 0.0
    %1485 = vmatpush1.msra.mxu0 0.0
    %1486 = vmatprep.subr.mxu0 0.0
    %1487 = vmatpush1.msra.mxu0 0.0
    %1488 = vmatprep.subr.mxu0 0.0
    %1489 = vmatpush1.msra.mxu0 0.0
    %1490 = vmatprep.subr.mxu0 0.0
    %1491 = vmatpush1.msra.mxu0 0.0
    %1492 = vmatprep.subr.mxu0 0.0
    %1493 = vmatpush1.msra.mxu0 0.0
    %1494 = vmatprep.subr.mxu0 0.0
    %1495 = vmatpush1.msra.mxu0 0.0
    %1496 = vmatprep.subr.mxu0 0.0
    %1497 = vmatpush1.msra.mxu0 0.0
    %1498 = vmatprep.subr.mxu0 0.0
    %1499 = vmatpush1.msra.mxu0 0.0
    %1500 = vmatprep.subr.mxu0 0.0
    %1501 = vmatpush1.msra.mxu0 0.0
    %1502 = vmatprep.subr.mxu0 0.0
    %1503 = vmatpush1.msra.mxu0 0.0
    %1504 = vmatprep.mubr.f32.mxu0 0.0
    %v1505 = vand.u32 %v1148, 4294901760
    %v1506 = vsub.f32 %v1148, %v1505
    %1507 = vmatmul.mubr.f32.gmra.mrb[0].mxu0 %v1506
    %v1508 = vpop.f32.mrb[0].mxu0
    %v1509 = vadd.f32 %v1393, %v1508
    %v1510 = vpop.f32.mrb[0].mxu0
    %1511 = vmatprep.mubr.f32.mxu0 0.0
    %v1512 = vand.u32 %v1151, 4294901760
    %v1513 = vsub.f32 %v1151, %v1512
    %1514 = vmatmul.mubr.f32.gmra.mrb[0].mxu0 %v1513
    %v1515 = vpop.f32.mrb[0].mxu0
    %v1516 = vadd.f32 %v1399, %v1515
    %v1517 = vpop.f32.mrb[0].mxu0
    %1518 = vmatprep.mubr.f32.mxu0 0.0
    %v1519 = vand.u32 %v1154, 4294901760
    %v1520 = vsub.f32 %v1154, %v1519
    %1521 = vmatmul.mubr.f32.gmra.mrb[0].mxu0 %v1520
    %v1522 = vpop.f32.mrb[0].mxu0
    %v1523 = vadd.f32 %v1405, %v1522
    %v1524 = vpop.f32.mrb[0].mxu0
    %1525 = vmatprep.mubr.f32.mxu0 0.0
    %v1526 = vand.u32 %v1157, 4294901760
    %v1527 = vsub.f32 %v1157, %v1526
    %1528 = vmatmul.mubr.f32.gmra.mrb[0].mxu0 %v1527
    %v1529 = vpop.f32.mrb[0].mxu0
    %v1530 = vadd.f32 %v1411, %v1529
    %v1531 = vpop.f32.mrb[0].mxu0
    %1532 = vmatprep.mubr.f32.mxu0 0.0
    %v1533 = vand.u32 %v1160, 4294901760
    %v1534 = vsub.f32 %v1160, %v1533
    %1535 = vmatmul.mubr.f32.gmra.mrb[0].mxu0 %v1534
    %v1536 = vpop.f32.mrb[0].mxu0
    %v1537 = vadd.f32 %v1417, %v1536
    %v1538 = vpop.f32.mrb[0].mxu0
    %1539 = vmatprep.mubr.f32.mxu0 0.0
    %v1540 = vand.u32 %v1163, 4294901760
    %v1541 = vsub.f32 %v1163, %v1540
    %1542 = vmatmul.mubr.f32.gmra.mrb[0].mxu0 %v1541
    %v1543 = vpop.f32.mrb[0].mxu0
    %v1544 = vadd.f32 %v1423, %v1543
    %v1545 = vpop.f32.mrb[0].mxu0
    %1546 = vmatprep.mubr.f32.mxu0 0.0
    %v1547 = vand.u32 %v1166, 4294901760
    %v1548 = vsub.f32 %v1166, %v1547
    %1549 = vmatmul.mubr.f32.gmra.mrb[0].mxu0 %v1548
    %v1550 = vpop.f32.mrb[0].mxu0
    %v1551 = vadd.f32 %v1429, %v1550
    %v1552 = vpop.f32.mrb[0].mxu0
    %1553 = vmatprep.mubr.f32.mxu0 0.0
    %v1554 = vand.u32 %v1169, 4294901760
    %v1555 = vsub.f32 %v1169, %v1554
    %1556 = vmatmul.mubr.f32.gmra.mrb[0].mxu0 %v1555
    %v1557 = vpop.f32.mrb[0].mxu0
    %v1558 = vadd.f32 %v1435, %v1557
    %v1559 = vpop.f32.mrb[0].mxu0
    %1560 = vdwg.mxu0
    %1561 = vmatprep.subr.mxu0 0.0
    %v1562 = vand.u32 %v1172, 4294901760
    %1563 = vmatpush1.msra.mxu0 %v1562
    %1564 = vmatprep.subr.mxu0 0.0
    %1565 = vmatpush1.msra.mxu0 0.0
    %1566 = vmatprep.subr.mxu0 0.0
    %1567 = vmatpush1.msra.mxu0 0.0
    %1568 = vmatprep.subr.mxu0 0.0
    %1569 = vmatpush1.msra.mxu0 0.0
    %1570 = vmatprep.subr.mxu0 0.0
    %1571 = vmatpush1.msra.mxu0 0.0
    %1572 = vmatprep.subr.mxu0 0.0
    %1573 = vmatpush1.msra.mxu0 0.0
    %1574 = vmatprep.subr.mxu0 0.0
    %1575 = vmatpush1.msra.mxu0 0.0
    %1576 = vmatprep.subr.mxu0 0.0
    %1577 = vmatpush1.msra.mxu0 0.0
    %1578 = vmatprep.subr.mxu0 0.0
    %1579 = vmatpush1.msra.mxu0 0.0
    %1580 = vmatprep.subr.mxu0 0.0
    %1581 = vmatpush1.msra.mxu0 0.0
    %1582 = vmatprep.subr.mxu0 0.0
    %1583 = vmatpush1.msra.mxu0 0.0
    %1584 = vmatprep.subr.mxu0 0.0
    %1585 = vmatpush1.msra.mxu0 0.0
    %1586 = vmatprep.subr.mxu0 0.0
    %1587 = vmatpush1.msra.mxu0 0.0
    %1588 = vmatprep.subr.mxu0 0.0
    %1589 = vmatpush1.msra.mxu0 0.0
    %1590 = vmatprep.subr.mxu0 0.0
    %1591 = vmatpush1.msra.mxu0 0.0
    %1592 = vmatprep.subr.mxu0 0.0
    %1593 = vmatpush1.msra.mxu0 0.0
    %1594 = vmatprep.subr.mxu0 0.0
    %1595 = vmatpush1.msra.mxu0 0.0
    %1596 = vmatprep.subr.mxu0 0.0
    %1597 = vmatpush1.msra.mxu0 0.0
    %1598 = vmatprep.subr.mxu0 0.0
    %1599 = vmatpush1.msra.mxu0 0.0
    %1600 = vmatprep.subr.mxu0 0.0
    %1601 = vmatpush1.msra.mxu0 0.0
    %1602 = vmatprep.subr.mxu0 0.0
    %1603 = vmatpush1.msra.mxu0 0.0
    %1604 = vmatprep.subr.mxu0 0.0
    %1605 = vmatpush1.msra.mxu0 0.0
    %1606 = vmatprep.subr.mxu0 0.0
    %1607 = vmatpush1.msra.mxu0 0.0
    %1608 = vmatprep.subr.mxu0 0.0
    %1609 = vmatpush1.msra.mxu0 0.0
    %1610 = vmatprep.subr.mxu0 0.0
    %1611 = vmatpush1.msra.mxu0 0.0
    %1612 = vmatprep.subr.mxu0 0.0
    %1613 = vmatpush1.msra.mxu0 0.0
    %1614 = vmatprep.subr.mxu0 0.0
    %1615 = vmatpush1.msra.mxu0 0.0
    %1616 = vmatprep.subr.mxu0 0.0
    %1617 = vmatpush1.msra.mxu0 0.0
    %1618 = vmatprep.subr.mxu0 0.0
    %1619 = vmatpush1.msra.mxu0 0.0
    %1620 = vmatprep.subr.mxu0 0.0
    %1621 = vmatpush1.msra.mxu0 0.0
    %1622 = vmatprep.subr.mxu0 0.0
    %1623 = vmatpush1.msra.mxu0 0.0
    %1624 = vmatprep.subr.mxu0 0.0
    %1625 = vmatpush1.msra.mxu0 0.0
    %1626 = vmatprep.mubr.f32.mxu0 0.0
    %v1627 = vand.u32 %v1148, 4294901760
    %v1628 = vsub.f32 %v1148, %v1627
    %v1629 = vand.u32 %v1628, 4294901760
    %1630 = vmatmul.mubr.f32.gmra.mrb[0].mxu0 %v1629
    %v1631 = vpop.f32.mrb[0].mxu0
    %v1632 = vadd.f32 %v1509, %v1631
    %v1633 = vpop.f32.mrb[0].mxu0
    %1634 = vmatprep.mubr.f32.mxu0 0.0
    %v1635 = vand.u32 %v1151, 4294901760
    %v1636 = vsub.f32 %v1151, %v1635
    %v1637 = vand.u32 %v1636, 4294901760
    %1638 = vmatmul.mubr.f32.gmra.mrb[0].mxu0 %v1637
    %v1639 = vpop.f32.mrb[0].mxu0
    %v1640 = vadd.f32 %v1516, %v1639
    %v1641 = vpop.f32.mrb[0].mxu0
    %1642 = vmatprep.mubr.f32.mxu0 0.0
    %v1643 = vand.u32 %v1154, 4294901760
    %v1644 = vsub.f32 %v1154, %v1643
    %v1645 = vand.u32 %v1644, 4294901760
    %1646 = vmatmul.mubr.f32.gmra.mrb[0].mxu0 %v1645
    %v1647 = vpop.f32.mrb[0].mxu0
    %v1648 = vadd.f32 %v1523, %v1647
    %v1649 = vpop.f32.mrb[0].mxu0
    %1650 = vmatprep.mubr.f32.mxu0 0.0
    %v1651 = vand.u32 %v1157, 4294901760
    %v1652 = vsub.f32 %v1157, %v1651
    %v1653 = vand.u32 %v1652, 4294901760
    %1654 = vmatmul.mubr.f32.gmra.mrb[0].mxu0 %v1653
    %v1655 = vpop.f32.mrb[0].mxu0
    %v1656 = vadd.f32 %v1530, %v1655
    %v1657 = vpop.f32.mrb[0].mxu0
    %1658 = vmatprep.mubr.f32.mxu0 0.0
    %v1659 = vand.u32 %v1160, 4294901760
    %v1660 = vsub.f32 %v1160, %v1659
    %v1661 = vand.u32 %v1660, 4294901760
    %1662 = vmatmul.mubr.f32.gmra.mrb[0].mxu0 %v1661
    %v1663 = vpop.f32.mrb[0].mxu0
    %v1664 = vadd.f32 %v1537, %v1663
    %v1665 = vpop.f32.mrb[0].mxu0
    %1666 = vmatprep.mubr.f32.mxu0 0.0
    %v1667 = vand.u32 %v1163, 4294901760
    %v1668 = vsub.f32 %v1163, %v1667
    %v1669 = vand.u32 %v1668, 4294901760
    %1670 = vmatmul.mubr.f32.gmra.mrb[0].mxu0 %v1669
    %v1671 = vpop.f32.mrb[0].mxu0
    %v1672 = vadd.f32 %v1544, %v1671
    %v1673 = vpop.f32.mrb[0].mxu0
    %1674 = vmatprep.mubr.f32.mxu0 0.0
    %v1675 = vand.u32 %v1166, 4294901760
    %v1676 = vsub.f32 %v1166, %v1675
    %v1677 = vand.u32 %v1676, 4294901760
    %1678 = vmatmul.mubr.f32.gmra.mrb[0].mxu0 %v1677
    %v1679 = vpop.f32.mrb[0].mxu0
    %v1680 = vadd.f32 %v1551, %v1679
    %v1681 = vpop.f32.mrb[0].mxu0
    %1682 = vmatprep.mubr.f32.mxu0 0.0
    %v1683 = vand.u32 %v1169, 4294901760
    %v1684 = vsub.f32 %v1169, %v1683
    %v1685 = vand.u32 %v1684, 4294901760
    %1686 = vmatmul.mubr.f32.gmra.mrb[0].mxu0 %v1685
    %v1687 = vpop.f32.mrb[0].mxu0
    %v1688 = vadd.f32 %v1558, %v1687
    %v1689 = vpop.f32.mrb[0].mxu0
    %1690 = vdwg.mxu0
    %1691 = vmatprep.subr.mxu0 0.0
    %v1692 = vand.u32 %v1172, 4294901760
    %v1693 = vsub.f32 %v1172, %v1692
    %v1694 = vand.u32 %v1693, 4294901760
    %1695 = vmatpush1.msra.mxu0 %v1694
    %1696 = vmatprep.subr.mxu0 0.0
    %1697 = vmatpush1.msra.mxu0 0.0
    %1698 = vmatprep.subr.mxu0 0.0
    %1699 = vmatpush1.msra.mxu0 0.0
    %1700 = vmatprep.subr.mxu0 0.0
    %1701 = vmatpush1.msra.mxu0 0.0
    %1702 = vmatprep.subr.mxu0 0.0
    %1703 = vmatpush1.msra.mxu0 0.0
    %1704 = vmatprep.subr.mxu0 0.0
    %1705 = vmatpush1.msra.mxu0 0.0
    %1706 = vmatprep.subr.mxu0 0.0
    %1707 = vmatpush1.msra.mxu0 0.0
    %1708 = vmatprep.subr.mxu0 0.0
    %1709 = vmatpush1.msra.mxu0 0.0
    %1710 = vmatprep.subr.mxu0 0.0
    %1711 = vmatpush1.msra.mxu0 0.0
    %1712 = vmatprep.subr.mxu0 0.0
    %1713 = vmatpush1.msra.mxu0 0.0
    %1714 = vmatprep.subr.mxu0 0.0
    %1715 = vmatpush1.msra.mxu0 0.0
    %1716 = vmatprep.subr.mxu0 0.0
    %1717 = vmatpush1.msra.mxu0 0.0
    %1718 = vmatprep.subr.mxu0 0.0
    %1719 = vmatpush1.msra.mxu0 0.0
    %1720 = vmatprep.subr.mxu0 0.0
    %1721 = vmatpush1.msra.mxu0 0.0
    %1722 = vmatprep.subr.mxu0 0.0
    %1723 = vmatpush1.msra.mxu0 0.0
    %1724 = vmatprep.subr.mxu0 0.0
    %1725 = vmatpush1.msra.mxu0 0.0
    %1726 = vmatprep.subr.mxu0 0.0
    %1727 = vmatpush1.msra.mxu0 0.0
    %1728 = vmatprep.subr.mxu0 0.0
    %1729 = vmatpush1.msra.mxu0 0.0
    %1730 = vmatprep.subr.mxu0 0.0
    %1731 = vmatpush1.msra.mxu0 0.0
    %1732 = vmatprep.subr.mxu0 0.0
    %1733 = vmatpush1.msra.mxu0 0.0
    %1734 = vmatprep.subr.mxu0 0.0
    %1735 = vmatpush1.msra.mxu0 0.0
    %1736 = vmatprep.subr.mxu0 0.0
    %1737 = vmatpush1.msra.mxu0 0.0
    %1738 = vmatprep.subr.mxu0 0.0
    %1739 = vmatpush1.msra.mxu0 0.0
    %1740 = vmatprep.subr.mxu0 0.0
    %1741 = vmatpush1.msra.mxu0 0.0
    %1742 = vmatprep.subr.mxu0 0.0
    %1743 = vmatpush1.msra.mxu0 0.0
    %1744 = vmatprep.subr.mxu0 0.0
    %1745 = vmatpush1.msra.mxu0 0.0
    %1746 = vmatprep.subr.mxu0 0.0
    %1747 = vmatpush1.msra.mxu0 0.0
    %1748 = vmatprep.subr.mxu0 0.0
    %1749 = vmatpush1.msra.mxu0 0.0
    %1750 = vmatprep.subr.mxu0 0.0
    %1751 = vmatpush1.msra.mxu0 0.0
    %1752 = vmatprep.subr.mxu0 0.0
    %1753 = vmatpush1.msra.mxu0 0.0
    %1754 = vmatprep.subr.mxu0 0.0
    %1755 = vmatpush1.msra.mxu0 0.0
    %1756 = vmatprep.subr.mxu0 0.0
    %1757 = vmatpush1.msra.mxu0 0.0
    %1758 = vmatprep.mubr.f32.mxu0 0.0
    %v1759 = vand.u32 %v1148, 4294901760
    %1760 = vmatmul.mubr.f32.gmra.mrb[0].mxu0 %v1759
    %v1761 = vpop.f32.mrb[0].mxu0
    %v1762 = vadd.f32 %v1632, %v1761
    %v1763 = vpop.f32.mrb[0].mxu0
    %1764 = vmatprep.mubr.f32.mxu0 0.0
    %v1765 = vand.u32 %v1151, 4294901760
    %1766 = vmatmul.mubr.f32.gmra.mrb[0].mxu0 %v1765
    %v1767 = vpop.f32.mrb[0].mxu0
    %v1768 = vadd.f32 %v1640, %v1767
    %v1769 = vpop.f32.mrb[0].mxu0
    %1770 = vmatprep.mubr.f32.mxu0 0.0
    %v1771 = vand.u32 %v1154, 4294901760
    %1772 = vmatmul.mubr.f32.gmra.mrb[0].mxu0 %v1771
    %v1773 = vpop.f32.mrb[0].mxu0
    %v1774 = vadd.f32 %v1648, %v1773
    %v1775 = vpop.f32.mrb[0].mxu0
    %1776 = vmatprep.mubr.f32.mxu0 0.0
    %v1777 = vand.u32 %v1157, 4294901760
    %1778 = vmatmul.mubr.f32.gmra.mrb[0].mxu0 %v1777
    %v1779 = vpop.f32.mrb[0].mxu0
    %v1780 = vadd.f32 %v1656, %v1779
    %v1781 = vpop.f32.mrb[0].mxu0
    %1782 = vmatprep.mubr.f32.mxu0 0.0
    %v1783 = vand.u32 %v1160, 4294901760
    %1784 = vmatmul.mubr.f32.gmra.mrb[0].mxu0 %v1783
    %v1785 = vpop.f32.mrb[0].mxu0
    %v1786 = vadd.f32 %v1664, %v1785
    %v1787 = vpop.f32.mrb[0].mxu0
    %1788 = vmatprep.mubr.f32.mxu0 0.0
    %v1789 = vand.u32 %v1163, 4294901760
    %1790 = vmatmul.mubr.f32.gmra.mrb[0].mxu0 %v1789
    %v1791 = vpop.f32.mrb[0].mxu0
    %v1792 = vadd.f32 %v1672, %v1791
    %v1793 = vpop.f32.mrb[0].mxu0
    %1794 = vmatprep.mubr.f32.mxu0 0.0
    %v1795 = vand.u32 %v1166, 4294901760
    %1796 = vmatmul.mubr.f32.gmra.mrb[0].mxu0 %v1795
    %v1797 = vpop.f32.mrb[0].mxu0
    %v1798 = vadd.f32 %v1680, %v1797
    %v1799 = vpop.f32.mrb[0].mxu0
    %1800 = vmatprep.mubr.f32.mxu0 0.0
    %v1801 = vand.u32 %v1169, 4294901760
    %1802 = vmatmul.mubr.f32.gmra.mrb[0].mxu0 %v1801
    %v1803 = vpop.f32.mrb[0].mxu0
    %v1804 = vadd.f32 %v1688, %v1803
    %v1805 = vpop.f32.mrb[0].mxu0
    %1806 = vdwg.mxu0
    %1807 = vmatprep.subr.mxu0 0.0
    %v1808 = vand.u32 %v1172, 4294901760
    %1809 = vmatpush1.msra.mxu0 %v1808
    %1810 = vmatprep.subr.mxu0 0.0
    %1811 = vmatpush1.msra.mxu0 0.0
    %1812 = vmatprep.subr.mxu0 0.0
    %1813 = vmatpush1.msra.mxu0 0.0
    %1814 = vmatprep.subr.mxu0 0.0
    %1815 = vmatpush1.msra.mxu0 0.0
    %1816 = vmatprep.subr.mxu0 0.0
    %1817 = vmatpush1.msra.mxu0 0.0
    %1818 = vmatprep.subr.mxu0 0.0
    %1819 = vmatpush1.msra.mxu0 0.0
    %1820 = vmatprep.subr.mxu0 0.0
    %1821 = vmatpush1.msra.mxu0 0.0
    %1822 = vmatprep.subr.mxu0 0.0
    %1823 = vmatpush1.msra.mxu0 0.0
    %1824 = vmatprep.subr.mxu0 0.0
    %1825 = vmatpush1.msra.mxu0 0.0
    %1826 = vmatprep.subr.mxu0 0.0
    %1827 = vmatpush1.msra.mxu0 0.0
    %1828 = vmatprep.subr.mxu0 0.0
    %1829 = vmatpush1.msra.mxu0 0.0
    %1830 = vmatprep.subr.mxu0 0.0
    %1831 = vmatpush1.msra.mxu0 0.0
    %1832 = vmatprep.subr.mxu0 0.0
    %1833 = vmatpush1.msra.mxu0 0.0
    %1834 = vmatprep.subr.mxu0 0.0
    %1835 = vmatpush1.msra.mxu0 0.0
    %1836 = vmatprep.subr.mxu0 0.0
    %1837 = vmatpush1.msra.mxu0 0.0
    %1838 = vmatprep.subr.mxu0 0.0
    %1839 = vmatpush1.msra.mxu0 0.0
    %1840 = vmatprep.subr.mxu0 0.0
    %1841 = vmatpush1.msra.mxu0 0.0
    %1842 = vmatprep.subr.mxu0 0.0
    %1843 = vmatpush1.msra.mxu0 0.0
    %1844 = vmatprep.subr.mxu0 0.0
    %1845 = vmatpush1.msra.mxu0 0.0
    %1846 = vmatprep.subr.mxu0 0.0
    %1847 = vmatpush1.msra.mxu0 0.0
    %1848 = vmatprep.subr.mxu0 0.0
    %1849 = vmatpush1.msra.mxu0 0.0
    %1850 = vmatprep.subr.mxu0 0.0
    %1851 = vmatpush1.msra.mxu0 0.0
    %1852 = vmatprep.subr.mxu0 0.0
    %1853 = vmatpush1.msra.mxu0 0.0
    %1854 = vmatprep.subr.mxu0 0.0
    %1855 = vmatpush1.msra.mxu0 0.0
    %1856 = vmatprep.subr.mxu0 0.0
    %1857 = vmatpush1.msra.mxu0 0.0
    %1858 = vmatprep.subr.mxu0 0.0
    %1859 = vmatpush1.msra.mxu0 0.0
    %1860 = vmatprep.subr.mxu0 0.0
    %1861 = vmatpush1.msra.mxu0 0.0
    %1862 = vmatprep.subr.mxu0 0.0
    %1863 = vmatpush1.msra.mxu0 0.0
    %1864 = vmatprep.subr.mxu0 0.0
    %1865 = vmatpush1.msra.mxu0 0.0
    %1866 = vmatprep.subr.mxu0 0.0
    %1867 = vmatpush1.msra.mxu0 0.0
    %1868 = vmatprep.subr.mxu0 0.0
    %1869 = vmatpush1.msra.mxu0 0.0
    %1870 = vmatprep.subr.mxu0 0.0
    %1871 = vmatpush1.msra.mxu0 0.0
    %1872 = vmatprep.mubr.f32.mxu0 0.0
    %v1873 = vand.u32 %v1148, 4294901760
    %1874 = vmatmul.mubr.f32.gmra.mrb[0].mxu0 %v1873
    %v1875 = vpop.f32.mrb[0].mxu0
    %v1876 = vadd.f32 %v1762, %v1875
    %v1877 = vpop.f32.mrb[0].mxu0
    %1878 = vmatprep.mubr.f32.mxu0 0.0
    %v1879 = vand.u32 %v1151, 4294901760
    %1880 = vmatmul.mubr.f32.gmra.mrb[0].mxu0 %v1879
    %v1881 = vpop.f32.mrb[0].mxu0
    %v1882 = vadd.f32 %v1768, %v1881
    %v1883 = vpop.f32.mrb[0].mxu0
    %1884 = vmatprep.mubr.f32.mxu0 0.0
    %v1885 = vand.u32 %v1154, 4294901760
    %1886 = vmatmul.mubr.f32.gmra.mrb[0].mxu0 %v1885
    %v1887 = vpop.f32.mrb[0].mxu0
    %v1888 = vadd.f32 %v1774, %v1887
    %v1889 = vpop.f32.mrb[0].mxu0
    %1890 = vmatprep.mubr.f32.mxu0 0.0
    %v1891 = vand.u32 %v1157, 4294901760
    %1892 = vmatmul.mubr.f32.gmra.mrb[0].mxu0 %v1891
    %v1893 = vpop.f32.mrb[0].mxu0
    %v1894 = vadd.f32 %v1780, %v1893
    %v1895 = vpop.f32.mrb[0].mxu0
    %1896 = vmatprep.mubr.f32.mxu0 0.0
    %v1897 = vand.u32 %v1160, 4294901760
    %1898 = vmatmul.mubr.f32.gmra.mrb[0].mxu0 %v1897
    %v1899 = vpop.f32.mrb[0].mxu0
    %v1900 = vadd.f32 %v1786, %v1899
    %v1901 = vpop.f32.mrb[0].mxu0
    %1902 = vmatprep.mubr.f32.mxu0 0.0
    %v1903 = vand.u32 %v1163, 4294901760
    %1904 = vmatmul.mubr.f32.gmra.mrb[0].mxu0 %v1903
    %v1905 = vpop.f32.mrb[0].mxu0
    %v1906 = vadd.f32 %v1792, %v1905
    %v1907 = vpop.f32.mrb[0].mxu0
    %1908 = vmatprep.mubr.f32.mxu0 0.0
    %v1909 = vand.u32 %v1166, 4294901760
    %1910 = vmatmul.mubr.f32.gmra.mrb[0].mxu0 %v1909
    %v1911 = vpop.f32.mrb[0].mxu0
    %v1912 = vadd.f32 %v1798, %v1911
    %v1913 = vpop.f32.mrb[0].mxu0
    %1914 = vmatprep.mubr.f32.mxu0 0.0
    %v1915 = vand.u32 %v1169, 4294901760
    %1916 = vmatmul.mubr.f32.gmra.mrb[0].mxu0 %v1915
    %v1917 = vpop.f32.mrb[0].mxu0
    %v1918 = vadd.f32 %v1804, %v1917
    %v1919 = vpop.f32.mrb[0].mxu0
    %1920 = vdwg.mxu0
    %v1921 = vtanh.pop %v1876
    %v1922 = vtanh.pop %v1882
    %v1923 = vtanh.pop %v1888
    %v1924 = vtanh.pop %v1894
    %v1925 = vtanh.pop %v1900
    %v1926 = vtanh.pop %v1906
    %v1927 = vtanh.pop %v1912
    %v1928 = vtanh.pop %v1918
    %v1929 = vld [vmem:[%s7] sm:$0x1]
    %v1930 = vld [vmem:[#allocation2] sm:$0x1]
    %1932 = vset.pattern.permute.xlu0 0
    %1933 = vperm.xlu0 %1932, %v1930
    %v1934 = vpop.permute.xlu0 %1933
    %v1936 = vlaneseq
    %v1937 = vshrl.u32 %v1936, 7
    %v1938 = vsub.s32 0, %v1937
    %v1939 = vrot.slane %v1934, %v1938
    %vm1940 = vcmask 523264
    %v1942 = vsel %vm1940, %v1929, 0
    %1944 = vmatprep.subr.mxu0 0.0
    %v1945 = vand.u32 %v1921, 4294901760
    %1946 = vmatpush1.msra.mxu0 %v1945
    %1947 = vmatprep.subr.mxu0 0.0
    %v1948 = vand.u32 %v1922, 4294901760
    %1949 = vmatpush1.msra.mxu0 %v1948
    %1950 = vmatprep.subr.mxu0 0.0
    %v1951 = vand.u32 %v1923, 4294901760
    %1952 = vmatpush1.msra.mxu0 %v1951
    %1953 = vmatprep.subr.mxu0 0.0
    %v1954 = vand.u32 %v1924, 4294901760
    %1955 = vmatpush1.msra.mxu0 %v1954
    %1956 = vmatprep.subr.mxu0 0.0
    %v1957 = vand.u32 %v1925, 4294901760
    %1958 = vmatpush1.msra.mxu0 %v1957
    %1959 = vmatprep.subr.mxu0 0.0
    %v1960 = vand.u32 %v1926, 4294901760
    %1961 = vmatpush1.msra.mxu0 %v1960
    %1962 = vmatprep.subr.mxu0 0.0
    %v1963 = vand.u32 %v1927, 4294901760
    %1964 = vmatpush1.msra.mxu0 %v1963
    %1965 = vmatprep.subr.mxu0 0.0
    %v1966 = vand.u32 %v1928, 4294901760
    %1967 = vmatpush1.msra.mxu0 %v1966
    %1968 = vmatprep.subr.mxu0 0.0
    %1969 = vmatpush1.msra.mxu0 0.0
    %1970 = vmatprep.subr.mxu0 0.0
    %1971 = vmatpush1.msra.mxu0 0.0
    %1972 = vmatprep.subr.mxu0 0.0
    %1973 = vmatpush1.msra.mxu0 0.0
    %1974 = vmatprep.subr.mxu0 0.0
    %1975 = vmatpush1.msra.mxu0 0.0
    %1976 = vmatprep.subr.mxu0 0.0
    %1977 = vmatpush1.msra.mxu0 0.0
    %1978 = vmatprep.subr.mxu0 0.0
    %1979 = vmatpush1.msra.mxu0 0.0
    %1980 = vmatprep.subr.mxu0 0.0
    %1981 = vmatpush1.msra.mxu0 0.0
    %1982 = vmatprep.subr.mxu0 0.0
    %1983 = vmatpush1.msra.mxu0 0.0
    %1984 = vmatprep.subr.mxu0 0.0
    %1985 = vmatpush1.msra.mxu0 0.0
    %1986 = vmatprep.subr.mxu0 0.0
    %1987 = vmatpush1.msra.mxu0 0.0
    %1988 = vmatprep.subr.mxu0 0.0
    %1989 = vmatpush1.msra.mxu0 0.0
    %1990 = vmatprep.subr.mxu0 0.0
    %1991 = vmatpush1.msra.mxu0 0.0
    %1992 = vmatprep.subr.mxu0 0.0
    %1993 = vmatpush1.msra.mxu0 0.0
    %1994 = vmatprep.subr.mxu0 0.0
    %1995 = vmatpush1.msra.mxu0 0.0
    %1996 = vmatprep.subr.mxu0 0.0
    %1997 = vmatpush1.msra.mxu0 0.0
    %1998 = vmatprep.subr.mxu0 0.0
    %1999 = vmatpush1.msra.mxu0 0.0
    %2000 = vmatprep.subr.mxu0 0.0
    %2001 = vmatpush1.msra.mxu0 0.0
    %2002 = vmatprep.subr.mxu0 0.0
    %2003 = vmatpush1.msra.mxu0 0.0
    %2004 = vmatprep.subr.mxu0 0.0
    %2005 = vmatpush1.msra.mxu0 0.0
    %2006 = vmatprep.subr.mxu0 0.0
    %2007 = vmatpush1.msra.mxu0 0.0
    %2008 = vmatprep.subr.mxu0 0.0
    %2009 = vmatpush1.msra.mxu0 0.0
    %2010 = vmatprep.subr.mxu0 0.0
    %2011 = vmatpush1.msra.mxu0 0.0
    %2012 = vmatprep.subr.mxu0 0.0
    %2013 = vmatpush1.msra.mxu0 0.0
    %2014 = vmatprep.subr.mxu0 0.0
    %2015 = vmatpush1.msra.mxu0 0.0
    %2016 = vmatprep.mubr.f32.mxu0 0.0
    %v2017 = vand.u32 %v1942, 4294901760
    %v2018 = vsub.f32 %v1942, %v2017
    %v2019 = vand.u32 %v2018, 4294901760
    %v2020 = vsub.f32 %v2018, %v2019
    %v2021 = vand.u32 %v2020, 4294901760
    %2022 = vmatmul.mubr.f32.gmra.mrb[0].mxu0 %v2021
    %v2023 = vpop.f32.mrb[0].mxu0
    %v2024 = vadd.f32 %v1939, %v2023
    %v2025 = vpop.f32.mrb[0].mxu0
    %2026 = vdwg.mxu0
    %2027 = vmatprep.subr.mxu0 0.0
    %v2028 = vand.u32 %v1921, 4294901760
    %v2029 = vsub.f32 %v1921, %v2028
    %v2030 = vand.u32 %v2029, 4294901760
    %v2031 = vsub.f32 %v2029, %v2030
    %v2032 = vand.u32 %v2031, 4294901760
    %2033 = vmatpush1.msra.mxu0 %v2032
    %2034 = vmatprep.subr.mxu0 0.0
    %v2035 = vand.u32 %v1922, 4294901760
    %v2036 = vsub.f32 %v1922, %v2035
    %v2037 = vand.u32 %v2036, 4294901760
    %v2038 = vsub.f32 %v2036, %v2037
    %v2039 = vand.u32 %v2038, 4294901760
    %2040 = vmatpush1.msra.mxu0 %v2039
    %2041 = vmatprep.subr.mxu0 0.0
    %v2042 = vand.u32 %v1923, 4294901760
    %v2043 = vsub.f32 %v1923, %v2042
    %v2044 = vand.u32 %v2043, 4294901760
    %v2045 = vsub.f32 %v2043, %v2044
    %v2046 = vand.u32 %v2045, 4294901760
    %2047 = vmatpush1.msra.mxu0 %v2046
    %2048 = vmatprep.subr.mxu0 0.0
    %v2049 = vand.u32 %v1924, 4294901760
    %v2050 = vsub.f32 %v1924, %v2049
    %v2051 = vand.u32 %v2050, 4294901760
    %v2052 = vsub.f32 %v2050, %v2051
    %v2053 = vand.u32 %v2052, 4294901760
    %2054 = vmatpush1.msra.mxu0 %v2053
    %2055 = vmatprep.subr.mxu0 0.0
    %v2056 = vand.u32 %v1925, 4294901760
    %v2057 = vsub.f32 %v1925, %v2056
    %v2058 = vand.u32 %v2057, 4294901760
    %v2059 = vsub.f32 %v2057, %v2058
    %v2060 = vand.u32 %v2059, 4294901760
    %2061 = vmatpush1.msra.mxu0 %v2060
    %2062 = vmatprep.subr.mxu0 0.0
    %v2063 = vand.u32 %v1926, 4294901760
    %v2064 = vsub.f32 %v1926, %v2063
    %v2065 = vand.u32 %v2064, 4294901760
    %v2066 = vsub.f32 %v2064, %v2065
    %v2067 = vand.u32 %v2066, 4294901760
    %2068 = vmatpush1.msra.mxu0 %v2067
    %2069 = vmatprep.subr.mxu0 0.0
    %v2070 = vand.u32 %v1927, 4294901760
    %v2071 = vsub.f32 %v1927, %v2070
    %v2072 = vand.u32 %v2071, 4294901760
    %v2073 = vsub.f32 %v2071, %v2072
    %v2074 = vand.u32 %v2073, 4294901760
    %2075 = vmatpush1.msra.mxu0 %v2074
    %2076 = vmatprep.subr.mxu0 0.0
    %v2077 = vand.u32 %v1928, 4294901760
    %v2078 = vsub.f32 %v1928, %v2077
    %v2079 = vand.u32 %v2078, 4294901760
    %v2080 = vsub.f32 %v2078, %v2079
    %v2081 = vand.u32 %v2080, 4294901760
    %2082 = vmatpush1.msra.mxu0 %v2081
    %2083 = vmatprep.subr.mxu0 0.0
    %2084 = vmatpush1.msra.mxu0 0.0
    %2085 = vmatprep.subr.mxu0 0.0
    %2086 = vmatpush1.msra.mxu0 0.0
    %2087 = vmatprep.subr.mxu0 0.0
    %2088 = vmatpush1.msra.mxu0 0.0
    %2089 = vmatprep.subr.mxu0 0.0
    %2090 = vmatpush1.msra.mxu0 0.0
    %2091 = vmatprep.subr.mxu0 0.0
    %2092 = vmatpush1.msra.mxu0 0.0
    %2093 = vmatprep.subr.mxu0 0.0
    %2094 = vmatpush1.msra.mxu0 0.0
    %2095 = vmatprep.subr.mxu0 0.0
    %2096 = vmatpush1.msra.mxu0 0.0
    %2097 = vmatprep.subr.mxu0 0.0
    %2098 = vmatpush1.msra.mxu0 0.0
    %2099 = vmatprep.subr.mxu0 0.0
    %2100 = vmatpush1.msra.mxu0 0.0
    %2101 = vmatprep.subr.mxu0 0.0
    %2102 = vmatpush1.msra.mxu0 0.0
    %2103 = vmatprep.subr.mxu0 0.0
    %2104 = vmatpush1.msra.mxu0 0.0
    %2105 = vmatprep.subr.mxu0 0.0
    %2106 = vmatpush1.msra.mxu0 0.0
    %2107 = vmatprep.subr.mxu0 0.0
    %2108 = vmatpush1.msra.mxu0 0.0
    %2109 = vmatprep.subr.mxu0 0.0
    %2110 = vmatpush1.msra.mxu0 0.0
    %2111 = vmatprep.subr.mxu0 0.0
    %2112 = vmatpush1.msra.mxu0 0.0
    %2113 = vmatprep.subr.mxu0 0.0
    %2114 = vmatpush1.msra.mxu0 0.0
    %2115 = vmatprep.subr.mxu0 0.0
    %2116 = vmatpush1.msra.mxu0 0.0
    %2117 = vmatprep.subr.mxu0 0.0
    %2118 = vmatpush1.msra.mxu0 0.0
    %2119 = vmatprep.subr.mxu0 0.0
    %2120 = vmatpush1.msra.mxu0 0.0
    %2121 = vmatprep.subr.mxu0 0.0
    %2122 = vmatpush1.msra.mxu0 0.0
    %2123 = vmatprep.subr.mxu0 0.0
    %2124 = vmatpush1.msra.mxu0 0.0
    %2125 = vmatprep.subr.mxu0 0.0
    %2126 = vmatpush1.msra.mxu0 0.0
    %2127 = vmatprep.subr.mxu0 0.0
    %2128 = vmatpush1.msra.mxu0 0.0
    %2129 = vmatprep.subr.mxu0 0.0
    %2130 = vmatpush1.msra.mxu0 0.0
    %2131 = vmatprep.mubr.f32.mxu0 0.0
    %v2132 = vand.u32 %v1942, 4294901760
    %2133 = vmatmul.mubr.f32.gmra.mrb[0].mxu0 %v2132
    %v2134 = vpop.f32.mrb[0].mxu0
    %v2135 = vadd.f32 %v2024, %v2134
    %v2136 = vpop.f32.mrb[0].mxu0
    %2137 = vdwg.mxu0
    %2138 = vmatprep.subr.mxu0 0.0
    %v2139 = vand.u32 %v1921, 4294901760
    %v2140 = vsub.f32 %v1921, %v2139
    %2141 = vmatpush1.msra.mxu0 %v2140
    %2142 = vmatprep.subr.mxu0 0.0
    %v2143 = vand.u32 %v1922, 4294901760
    %v2144 = vsub.f32 %v1922, %v2143
    %2145 = vmatpush1.msra.mxu0 %v2144
    %2146 = vmatprep.subr.mxu0 0.0
    %v2147 = vand.u32 %v1923, 4294901760
    %v2148 = vsub.f32 %v1923, %v2147
    %2149 = vmatpush1.msra.mxu0 %v2148
    %2150 = vmatprep.subr.mxu0 0.0
    %v2151 = vand.u32 %v1924, 4294901760
    %v2152 = vsub.f32 %v1924, %v2151
    %2153 = vmatpush1.msra.mxu0 %v2152
    %2154 = vmatprep.subr.mxu0 0.0
    %v2155 = vand.u32 %v1925, 4294901760
    %v2156 = vsub.f32 %v1925, %v2155
    %2157 = vmatpush1.msra.mxu0 %v2156
    %2158 = vmatprep.subr.mxu0 0.0
    %v2159 = vand.u32 %v1926, 4294901760
    %v2160 = vsub.f32 %v1926, %v2159
    %2161 = vmatpush1.msra.mxu0 %v2160
    %2162 = vmatprep.subr.mxu0 0.0
    %v2163 = vand.u32 %v1927, 4294901760
    %v2164 = vsub.f32 %v1927, %v2163
    %2165 = vmatpush1.msra.mxu0 %v2164
    %2166 = vmatprep.subr.mxu0 0.0
    %v2167 = vand.u32 %v1928, 4294901760
    %v2168 = vsub.f32 %v1928, %v2167
    %2169 = vmatpush1.msra.mxu0 %v2168
    %2170 = vmatprep.subr.mxu0 0.0
    %2171 = vmatpush1.msra.mxu0 0.0
    %2172 = vmatprep.subr.mxu0 0.0
    %2173 = vmatpush1.msra.mxu0 0.0
    %2174 = vmatprep.subr.mxu0 0.0
    %2175 = vmatpush1.msra.mxu0 0.0
    %2176 = vmatprep.subr.mxu0 0.0
    %2177 = vmatpush1.msra.mxu0 0.0
    %2178 = vmatprep.subr.mxu0 0.0
    %2179 = vmatpush1.msra.mxu0 0.0
    %2180 = vmatprep.subr.mxu0 0.0
    %2181 = vmatpush1.msra.mxu0 0.0
    %2182 = vmatprep.subr.mxu0 0.0
    %2183 = vmatpush1.msra.mxu0 0.0
    %2184 = vmatprep.subr.mxu0 0.0
    %2185 = vmatpush1.msra.mxu0 0.0
    %2186 = vmatprep.subr.mxu0 0.0
    %2187 = vmatpush1.msra.mxu0 0.0
    %2188 = vmatprep.subr.mxu0 0.0
    %2189 = vmatpush1.msra.mxu0 0.0
    %2190 = vmatprep.subr.mxu0 0.0
    %2191 = vmatpush1.msra.mxu0 0.0
    %2192 = vmatprep.subr.mxu0 0.0
    %2193 = vmatpush1.msra.mxu0 0.0
    %2194 = vmatprep.subr.mxu0 0.0
    %2195 = vmatpush1.msra.mxu0 0.0
    %2196 = vmatprep.subr.mxu0 0.0
    %2197 = vmatpush1.msra.mxu0 0.0
    %2198 = vmatprep.subr.mxu0 0.0
    %2199 = vmatpush1.msra.mxu0 0.0
    %2200 = vmatprep.subr.mxu0 0.0
    %2201 = vmatpush1.msra.mxu0 0.0
    %2202 = vmatprep.subr.mxu0 0.0
    %2203 = vmatpush1.msra.mxu0 0.0
    %2204 = vmatprep.subr.mxu0 0.0
    %2205 = vmatpush1.msra.mxu0 0.0
    %2206 = vmatprep.subr.mxu0 0.0
    %2207 = vmatpush1.msra.mxu0 0.0
    %2208 = vmatprep.subr.mxu0 0.0
    %2209 = vmatpush1.msra.mxu0 0.0
    %2210 = vmatprep.subr.mxu0 0.0
    %2211 = vmatpush1.msra.mxu0 0.0
    %2212 = vmatprep.subr.mxu0 0.0
    %2213 = vmatpush1.msra.mxu0 0.0
    %2214 = vmatprep.subr.mxu0 0.0
    %2215 = vmatpush1.msra.mxu0 0.0
    %2216 = vmatprep.subr.mxu0 0.0
    %2217 = vmatpush1.msra.mxu0 0.0
    %2218 = vmatprep.mubr.f32.mxu0 0.0
    %v2219 = vand.u32 %v1942, 4294901760
    %v2220 = vsub.f32 %v1942, %v2219
    %2221 = vmatmul.mubr.f32.gmra.mrb[0].mxu0 %v2220
    %v2222 = vpop.f32.mrb[0].mxu0
    %v2223 = vadd.f32 %v2135, %v2222
    %v2224 = vpop.f32.mrb[0].mxu0
    %2225 = vdwg.mxu0
    %2226 = vmatprep.subr.mxu0 0.0
    %v2227 = vand.u32 %v1921, 4294901760
    %2228 = vmatpush1.msra.mxu0 %v2227
    %2229 = vmatprep.subr.mxu0 0.0
    %v2230 = vand.u32 %v1922, 4294901760
    %2231 = vmatpush1.msra.mxu0 %v2230
    %2232 = vmatprep.subr.mxu0 0.0
    %v2233 = vand.u32 %v1923, 4294901760
    %2234 = vmatpush1.msra.mxu0 %v2233
    %2235 = vmatprep.subr.mxu0 0.0
    %v2236 = vand.u32 %v1924, 4294901760
    %2237 = vmatpush1.msra.mxu0 %v2236
    %2238 = vmatprep.subr.mxu0 0.0
    %v2239 = vand.u32 %v1925, 4294901760
    %2240 = vmatpush1.msra.mxu0 %v2239
    %2241 = vmatprep.subr.mxu0 0.0
    %v2242 = vand.u32 %v1926, 4294901760
    %2243 = vmatpush1.msra.mxu0 %v2242
    %2244 = vmatprep.subr.mxu0 0.0
    %v2245 = vand.u32 %v1927, 4294901760
    %2246 = vmatpush1.msra.mxu0 %v2245
    %2247 = vmatprep.subr.mxu0 0.0
    %v2248 = vand.u32 %v1928, 4294901760
    %2249 = vmatpush1.msra.mxu0 %v2248
    %2250 = vmatprep.subr.mxu0 0.0
    %2251 = vmatpush1.msra.mxu0 0.0
    %2252 = vmatprep.subr.mxu0 0.0
    %2253 = vmatpush1.msra.mxu0 0.0
    %2254 = vmatprep.subr.mxu0 0.0
    %2255 = vmatpush1.msra.mxu0 0.0
    %2256 = vmatprep.subr.mxu0 0.0
    %2257 = vmatpush1.msra.mxu0 0.0
    %2258 = vmatprep.subr.mxu0 0.0
    %2259 = vmatpush1.msra.mxu0 0.0
    %2260 = vmatprep.subr.mxu0 0.0
    %2261 = vmatpush1.msra.mxu0 0.0
    %2262 = vmatprep.subr.mxu0 0.0
    %2263 = vmatpush1.msra.mxu0 0.0
    %2264 = vmatprep.subr.mxu0 0.0
    %2265 = vmatpush1.msra.mxu0 0.0
    %2266 = vmatprep.subr.mxu0 0.0
    %2267 = vmatpush1.msra.mxu0 0.0
    %2268 = vmatprep.subr.mxu0 0.0
    %2269 = vmatpush1.msra.mxu0 0.0
    %2270 = vmatprep.subr.mxu0 0.0
    %2271 = vmatpush1.msra.mxu0 0.0
    %2272 = vmatprep.subr.mxu0 0.0
    %2273 = vmatpush1.msra.mxu0 0.0
    %2274 = vmatprep.subr.mxu0 0.0
    %2275 = vmatpush1.msra.mxu0 0.0
    %2276 = vmatprep.subr.mxu0 0.0
    %2277 = vmatpush1.msra.mxu0 0.0
    %2278 = vmatprep.subr.mxu0 0.0
    %2279 = vmatpush1.msra.mxu0 0.0
    %2280 = vmatprep.subr.mxu0 0.0
    %2281 = vmatpush1.msra.mxu0 0.0
    %2282 = vmatprep.subr.mxu0 0.0
    %2283 = vmatpush1.msra.mxu0 0.0
    %2284 = vmatprep.subr.mxu0 0.0
    %2285 = vmatpush1.msra.mxu0 0.0
    %2286 = vmatprep.subr.mxu0 0.0
    %2287 = vmatpush1.msra.mxu0 0.0
    %2288 = vmatprep.subr.mxu0 0.0
    %2289 = vmatpush1.msra.mxu0 0.0
    %2290 = vmatprep.subr.mxu0 0.0
    %2291 = vmatpush1.msra.mxu0 0.0
    %2292 = vmatprep.subr.mxu0 0.0
    %2293 = vmatpush1.msra.mxu0 0.0
    %2294 = vmatprep.subr.mxu0 0.0
    %2295 = vmatpush1.msra.mxu0 0.0
    %2296 = vmatprep.subr.mxu0 0.0
    %2297 = vmatpush1.msra.mxu0 0.0
    %2298 = vmatprep.mubr.f32.mxu0 0.0
    %v2299 = vand.u32 %v1942, 4294901760
    %v2300 = vsub.f32 %v1942, %v2299
    %v2301 = vand.u32 %v2300, 4294901760
    %2302 = vmatmul.mubr.f32.gmra.mrb[0].mxu0 %v2301
    %v2303 = vpop.f32.mrb[0].mxu0
    %v2304 = vadd.f32 %v2223, %v2303
    %v2305 = vpop.f32.mrb[0].mxu0
    %2306 = vdwg.mxu0
    %2307 = vmatprep.subr.mxu0 0.0
    %v2308 = vand.u32 %v1921, 4294901760
    %v2309 = vsub.f32 %v1921, %v2308
    %v2310 = vand.u32 %v2309, 4294901760
    %2311 = vmatpush1.msra.mxu0 %v2310
    %2312 = vmatprep.subr.mxu0 0.0
    %v2313 = vand.u32 %v1922, 4294901760
    %v2314 = vsub.f32 %v1922, %v2313
    %v2315 = vand.u32 %v2314, 4294901760
    %2316 = vmatpush1.msra.mxu0 %v2315
    %2317 = vmatprep.subr.mxu0 0.0
    %v2318 = vand.u32 %v1923, 4294901760
    %v2319 = vsub.f32 %v1923, %v2318
    %v2320 = vand.u32 %v2319, 4294901760
    %2321 = vmatpush1.msra.mxu0 %v2320
    %2322 = vmatprep.subr.mxu0 0.0
    %v2323 = vand.u32 %v1924, 4294901760
    %v2324 = vsub.f32 %v1924, %v2323
    %v2325 = vand.u32 %v2324, 4294901760
    %2326 = vmatpush1.msra.mxu0 %v2325
    %2327 = vmatprep.subr.mxu0 0.0
    %v2328 = vand.u32 %v1925, 4294901760
    %v2329 = vsub.f32 %v1925, %v2328
    %v2330 = vand.u32 %v2329, 4294901760
    %2331 = vmatpush1.msra.mxu0 %v2330
    %2332 = vmatprep.subr.mxu0 0.0
    %v2333 = vand.u32 %v1926, 4294901760
    %v2334 = vsub.f32 %v1926, %v2333
    %v2335 = vand.u32 %v2334, 4294901760
    %2336 = vmatpush1.msra.mxu0 %v2335
    %2337 = vmatprep.subr.mxu0 0.0
    %v2338 = vand.u32 %v1927, 4294901760
    %v2339 = vsub.f32 %v1927, %v2338
    %v2340 = vand.u32 %v2339, 4294901760
    %2341 = vmatpush1.msra.mxu0 %v2340
    %2342 = vmatprep.subr.mxu0 0.0
    %v2343 = vand.u32 %v1928, 4294901760
    %v2344 = vsub.f32 %v1928, %v2343
    %v2345 = vand.u32 %v2344, 4294901760
    %2346 = vmatpush1.msra.mxu0 %v2345
    %2347 = vmatprep.subr.mxu0 0.0
    %2348 = vmatpush1.msra.mxu0 0.0
    %2349 = vmatprep.subr.mxu0 0.0
    %2350 = vmatpush1.msra.mxu0 0.0
    %2351 = vmatprep.subr.mxu0 0.0
    %2352 = vmatpush1.msra.mxu0 0.0
    %2353 = vmatprep.subr.mxu0 0.0
    %2354 = vmatpush1.msra.mxu0 0.0
    %2355 = vmatprep.subr.mxu0 0.0
    %2356 = vmatpush1.msra.mxu0 0.0
    %2357 = vmatprep.subr.mxu0 0.0
    %2358 = vmatpush1.msra.mxu0 0.0
    %2359 = vmatprep.subr.mxu0 0.0
    %2360 = vmatpush1.msra.mxu0 0.0
    %2361 = vmatprep.subr.mxu0 0.0
    %2362 = vmatpush1.msra.mxu0 0.0
    %2363 = vmatprep.subr.mxu0 0.0
    %2364 = vmatpush1.msra.mxu0 0.0
    %2365 = vmatprep.subr.mxu0 0.0
    %2366 = vmatpush1.msra.mxu0 0.0
    %2367 = vmatprep.subr.mxu0 0.0
    %2368 = vmatpush1.msra.mxu0 0.0
    %2369 = vmatprep.subr.mxu0 0.0
    %2370 = vmatpush1.msra.mxu0 0.0
    %2371 = vmatprep.subr.mxu0 0.0
    %2372 = vmatpush1.msra.mxu0 0.0
    %2373 = vmatprep.subr.mxu0 0.0
    %2374 = vmatpush1.msra.mxu0 0.0
    %2375 = vmatprep.subr.mxu0 0.0
    %2376 = vmatpush1.msra.mxu0 0.0
    %2377 = vmatprep.subr.mxu0 0.0
    %2378 = vmatpush1.msra.mxu0 0.0
    %2379 = vmatprep.subr.mxu0 0.0
    %2380 = vmatpush1.msra.mxu0 0.0
    %2381 = vmatprep.subr.mxu0 0.0
    %2382 = vmatpush1.msra.mxu0 0.0
    %2383 = vmatprep.subr.mxu0 0.0
    %2384 = vmatpush1.msra.mxu0 0.0
    %2385 = vmatprep.subr.mxu0 0.0
    %2386 = vmatpush1.msra.mxu0 0.0
    %2387 = vmatprep.subr.mxu0 0.0
    %2388 = vmatpush1.msra.mxu0 0.0
    %2389 = vmatprep.subr.mxu0 0.0
    %2390 = vmatpush1.msra.mxu0 0.0
    %2391 = vmatprep.subr.mxu0 0.0
    %2392 = vmatpush1.msra.mxu0 0.0
    %2393 = vmatprep.subr.mxu0 0.0
    %2394 = vmatpush1.msra.mxu0 0.0
    %2395 = vmatprep.mubr.f32.mxu0 0.0
    %v2396 = vand.u32 %v1942, 4294901760
    %2397 = vmatmul.mubr.f32.gmra.mrb[0].mxu0 %v2396
    %v2398 = vpop.f32.mrb[0].mxu0
    %v2399 = vadd.f32 %v2304, %v2398
    %v2400 = vpop.f32.mrb[0].mxu0
    %2401 = vdwg.mxu0
    %2402 = vmatprep.subr.mxu0 0.0
    %v2403 = vand.u32 %v1921, 4294901760
    %2404 = vmatpush1.msra.mxu0 %v2403
    %2405 = vmatprep.subr.mxu0 0.0
    %v2406 = vand.u32 %v1922, 4294901760
    %2407 = vmatpush1.msra.mxu0 %v2406
    %2408 = vmatprep.subr.mxu0 0.0
    %v2409 = vand.u32 %v1923, 4294901760
    %2410 = vmatpush1.msra.mxu0 %v2409
    %2411 = vmatprep.subr.mxu0 0.0
    %v2412 = vand.u32 %v1924, 4294901760
    %2413 = vmatpush1.msra.mxu0 %v2412
    %2414 = vmatprep.subr.mxu0 0.0
    %v2415 = vand.u32 %v1925, 4294901760
    %2416 = vmatpush1.msra.mxu0 %v2415
    %2417 = vmatprep.subr.mxu0 0.0
    %v2418 = vand.u32 %v1926, 4294901760
    %2419 = vmatpush1.msra.mxu0 %v2418
    %2420 = vmatprep.subr.mxu0 0.0
    %v2421 = vand.u32 %v1927, 4294901760
    %2422 = vmatpush1.msra.mxu0 %v2421
    %2423 = vmatprep.subr.mxu0 0.0
    %v2424 = vand.u32 %v1928, 4294901760
    %2425 = vmatpush1.msra.mxu0 %v2424
    %2426 = vmatprep.subr.mxu0 0.0
    %2427 = vmatpush1.msra.mxu0 0.0
    %2428 = vmatprep.subr.mxu0 0.0
    %2429 = vmatpush1.msra.mxu0 0.0
    %2430 = vmatprep.subr.mxu0 0.0
    %2431 = vmatpush1.msra.mxu0 0.0
    %2432 = vmatprep.subr.mxu0 0.0
    %2433 = vmatpush1.msra.mxu0 0.0
    %2434 = vmatprep.subr.mxu0 0.0
    %2435 = vmatpush1.msra.mxu0 0.0
    %2436 = vmatprep.subr.mxu0 0.0
    %2437 = vmatpush1.msra.mxu0 0.0
    %2438 = vmatprep.subr.mxu0 0.0
    %2439 = vmatpush1.msra.mxu0 0.0
    %2440 = vmatprep.subr.mxu0 0.0
    %2441 = vmatpush1.msra.mxu0 0.0
    %2442 = vmatprep.subr.mxu0 0.0
    %2443 = vmatpush1.msra.mxu0 0.0
    %2444 = vmatprep.subr.mxu0 0.0
    %2445 = vmatpush1.msra.mxu0 0.0
    %2446 = vmatprep.subr.mxu0 0.0
    %2447 = vmatpush1.msra.mxu0 0.0
    %2448 = vmatprep.subr.mxu0 0.0
    %2449 = vmatpush1.msra.mxu0 0.0
    %2450 = vmatprep.subr.mxu0 0.0
    %2451 = vmatpush1.msra.mxu0 0.0
    %2452 = vmatprep.subr.mxu0 0.0
    %2453 = vmatpush1.msra.mxu0 0.0
    %2454 = vmatprep.subr.mxu0 0.0
    %2455 = vmatpush1.msra.mxu0 0.0
    %2456 = vmatprep.subr.mxu0 0.0
    %2457 = vmatpush1.msra.mxu0 0.0
    %2458 = vmatprep.subr.mxu0 0.0
    %2459 = vmatpush1.msra.mxu0 0.0
    %2460 = vmatprep.subr.mxu0 0.0
    %2461 = vmatpush1.msra.mxu0 0.0
    %2462 = vmatprep.subr.mxu0 0.0
    %2463 = vmatpush1.msra.mxu0 0.0
    %2464 = vmatprep.subr.mxu0 0.0
    %2465 = vmatpush1.msra.mxu0 0.0
    %2466 = vmatprep.subr.mxu0 0.0
    %2467 = vmatpush1.msra.mxu0 0.0
    %2468 = vmatprep.subr.mxu0 0.0
    %2469 = vmatpush1.msra.mxu0 0.0
    %2470 = vmatprep.subr.mxu0 0.0
    %2471 = vmatpush1.msra.mxu0 0.0
    %2472 = vmatprep.subr.mxu0 0.0
    %2473 = vmatpush1.msra.mxu0 0.0
    %2474 = vmatprep.mubr.f32.mxu0 0.0
    %v2475 = vand.u32 %v1942, 4294901760
    %2476 = vmatmul.mubr.f32.gmra.mrb[0].mxu0 %v2475
    %v2477 = vpop.f32.mrb[0].mxu0
    %v2478 = vadd.f32 %v2399, %v2477
    %v2479 = vpop.f32.mrb[0].mxu0
    %2480 = vdwg.mxu0
    %2481 = vst [vmem:[#allocation3] sm:$0x1] %v2478
    // Predicated region
    $region38: #{tpu_custom_call.1} parent=1 // pred_check
      _
    $region39: #{tpu_custom_call.1} parent=1 // pred_check_branch
      %2483 = sbr.rel (0) target = $region41
    $region40: #{tpu_custom_call.1} parent=1 // pred_region
      %s2485 = ssub.s32 16, 16
      %2486 = vsyncadd [#allocation4], %s2485
      %s2488 = sshll.u32 [#allocation3], 4
      %s2489 = int_to_ptr.vmem [resolvable:$true] %s2488
      %2491 = dma.vmem_to_hbm [thread:$0]  %s2489, 16, %s9, [#allocation4]
    $region41: #{tpu_custom_call.1} parent=1 // pred_fallthru
      _
    // Predicated region
    $region42: #{tpu_custom_call.1} parent=1 // pred_check
      _
    $region43: #{tpu_custom_call.1} parent=1 // pred_check_branch
      %2493 = sbr.rel (0) target = $region45
    $region44: #{tpu_custom_call.1} parent=1 // pred_region
      %2494 = dma.done [#allocation4], 16
    $region45: #{tpu_custom_call.1} parent=1 // pred_fallthru
      _
    %2495 = vsyncpa [#allocation4], 1

</llo_original>
